<compile_context>
chip_gen: v7x
topology: tpu7x:2x2x1
jax: 0.10.0
libtpu: 0.0.40
codegen_flags: <defaults>
</compile_context>

<pallas_src>
import functools

import jax
import jax.numpy as jnp
from jax.experimental import pallas as pl
from jax.experimental.pallas import tpu as pltpu


# ----------------------------------------------------------------------------
# Fused kernel: one spatial row-band of one image per grid step.
# ----------------------------------------------------------------------------
def _fused_kernel(*refs, k, stride, p, bot, Bo, Bi, W, Wo, Cin, Cexp, Cout, nb,
                  shortcut):
    if shortcut == "conv":
        (x_cur_ref, x_next_ref, w1_ref, b1_ref, wdw_ref, b2_ref,
         w3_ref, b3_ref, wsc_ref, bsc_ref, o_ref, carry_ref) = refs
    else:
        (x_cur_ref, x_next_ref, w1_ref, b1_ref, wdw_ref, b2_ref,
         w3_ref, b3_ref, o_ref, carry_ref) = refs

    b = pl.program_id(1)

    # Previous band's last p expanded rows (top halo). Read before overwriting.
    carry_prev = carry_ref[...]                                  # (p, W, Cexp)

    # ---- expand: 1x1 conv (BN scale folded into w1) + bias + ReLU ----------
    # Also expand the first `bot` rows of the NEXT input band (bottom halo)
    # in the same matmul.
    x_c = x_cur_ref[...].reshape(Bi, W, Cin)
    if bot > 0:
        x_n = x_next_ref[0, 0:bot, :, :]                         # (bot, W, Cin)
        x_in = jnp.concatenate([x_c, x_n], axis=0)               # (Bi+bot, W, Cin)
    else:
        x_in = x_c
    h = jnp.dot(x_in.reshape((Bi + bot) * W, Cin), w1_ref[...],
                preferred_element_type=jnp.float32)
    h = jnp.maximum(h + b1_ref[...], 0.0).reshape(Bi + bot, W, Cexp)
    h_cur = h[0:Bi]                                              # (Bi, W, Cexp)

    # New carry = last p expanded rows of the current band.
    carry_ref[...] = h_cur[Bi - p:Bi]

    # Assemble the depthwise input band (with zero halos at image borders).
    top = jnp.where(b == 0, 0.0, carry_prev)                     # (p, W, Cexp)
    pieces = [top, h_cur]
    if bot > 0:
        h_bot = jnp.where(b == nb - 1, 0.0, h[Bi:Bi + bot])      # (bot, W, Cexp)
        pieces.append(h_bot)
    rows = jnp.concatenate(pieces, axis=0)                       # (Ht, W, Cexp)
    Ht = p + Bi + bot
    zcol = jnp.zeros((Ht, p, Cexp), jnp.float32)
    band = jnp.concatenate([zcol, rows, zcol], axis=1)           # (Ht, W+2p, Cexp)

    # ---- depthwise kxk conv (BN scale folded into wdw) + bias + ReLU -------
    wdw = wdw_ref[...]
    acc = jnp.zeros((Bo, Wo, Cexp), jnp.float32)
    for i in range(k):
        for j in range(k):
            # stride==1: unstrided shifted-window reads of the resident band.
            tap = jax.lax.slice(
                band, (i, j, 0),
                (i + stride * (Bo - 1) + 1, j + stride * (Wo - 1) + 1, Cexp),
                (stride, stride, 1))
            acc = acc + tap * wdw[i, j, :]
    h2 = jnp.maximum(acc + b2_ref[...], 0.0)                     # (Bo, Wo, Cexp)

    # ---- project: 1x1 conv (BN scale folded into w3) + bias + shortcut -----
    y = jnp.dot(h2.reshape(Bo * Wo, Cexp), w3_ref[...],
                preferred_element_type=jnp.float32) + b3_ref[...]
    if shortcut == "identity":
        # Direct VPU add of the input tile (no eye-matmul).
        y = y + x_c.reshape(Bo * Wo, Cin)
    elif shortcut == "conv":
        y = y + jnp.dot(x_c.reshape(Bo * Wo, Cin), wsc_ref[...],
                        preferred_element_type=jnp.float32) + bsc_ref[...]

    o_ref[...] = y.reshape(1, Bo, Wo, Cout).astype(o_ref.dtype)


# ----------------------------------------------------------------------------
# Wrapper: BN folding, band selection, pallas_call plumbing (NHWC).
# ----------------------------------------------------------------------------
def fold_bn(gamma, beta, mean, var, eps=1e-5):
    scale = gamma / jnp.sqrt(var + eps)
    bias = beta - mean * scale
    return scale, bias


def _pick_band(Ho, target):
    best = 1
    for cand in range(1, min(target, Ho) + 1):
        if Ho % cand == 0:
            best = cand
    return best


def inverted_residual_forward_nhwc(x, params, *, kernel_size, stride,
                                   band_rows=8):
    """x: (N, H, W, Cin) NHWC. Returns (N, Ho, Wo, Cout) NHWC."""
    N, H, W, Cin = x.shape
    k = kernel_size
    assert k % 2 == 1 and k >= 3, "expect odd kernel_size >= 3"
    p = k // 2
    s = stride

    # Fold BN scale into the conv weights; kernels only add bias.
    w1 = params["w1"]
    Cexp = w1.shape[1]
    s1, b1 = fold_bn(*params["bn1"])
    w1s = w1 * s1[None, :]
    s2, b2 = fold_bn(*params["bn2"])
    wdws = params["w_dw"] * s2[None, None, :]
    w3 = params["w3"]
    Cout = w3.shape[1]
    s3, b3 = fold_bn(*params["bn3"])
    w3s = w3 * s3[None, :]

    Ho = (H + 2 * p - k) // s + 1
    Wo = (W + 2 * p - k) // s + 1
    if s > 1:
        # TODO(synk): general stride>1 tail handling; even spatial dims assumed.
        assert Ho * s == H, "stride>1 band tiling requires Ho*stride == H"

    Bo = _pick_band(Ho, band_rows)          # output rows per band (divides Ho)
    nb = Ho // Bo
    Bi = Bo * s                             # input rows per band
    bot = max(k - p - s, 0)                 # look-ahead rows from next band

    if s == 1:
        shortcut = "identity" if Cin == Cout else "conv"
    else:
        shortcut = "none"

    in_specs = [
        pl.BlockSpec((1, Bi, W, Cin), lambda n, b: (n, b, 0, 0)),
        (pl.BlockSpec((1, Bi, W, Cin),
                      lambda n, b: (n, jnp.minimum(b + 1, nb - 1), 0, 0))
         if bot > 0 else
         pl.BlockSpec((1, 1, W, Cin), lambda n, b: (n, 0, 0, 0))),  # unused
        pl.BlockSpec((Cin, Cexp), lambda n, b: (0, 0)),
        pl.BlockSpec((1, Cexp), lambda n, b: (0, 0)),
        pl.BlockSpec((k, k, Cexp), lambda n, b: (0, 0, 0)),
        pl.BlockSpec((1, Cexp), lambda n, b: (0, 0)),
        pl.BlockSpec((Cexp, Cout), lambda n, b: (0, 0)),
        pl.BlockSpec((1, Cout), lambda n, b: (0, 0)),
    ]
    operands = [x, x, w1s, b1.reshape(1, Cexp), wdws, b2.reshape(1, Cexp),
                w3s, b3.reshape(1, Cout)]

    if shortcut == "conv":
        ssc, bsc = fold_bn(*params["bnsc"])
        wscs = params["wsc"] * ssc[None, :]
        in_specs += [pl.BlockSpec((Cin, Cout), lambda n, b: (0, 0)),
                     pl.BlockSpec((1, Cout), lambda n, b: (0, 0))]
        operands += [wscs, bsc.reshape(1, Cout)]

    kernel = functools.partial(
        _fused_kernel, k=k, stride=s, p=p, bot=bot, Bo=Bo, Bi=Bi, W=W, Wo=Wo,
        Cin=Cin, Cexp=Cexp, Cout=Cout, nb=nb, shortcut=shortcut)

    return pl.pallas_call(
        kernel,
        out_shape=jax.ShapeDtypeStruct((N, Ho, Wo, Cout), x.dtype),
        grid_spec=pltpu.PrefetchScalarGridSpec(
            num_scalar_prefetch=0,
            grid=(N, nb),
            in_specs=in_specs,
            out_specs=pl.BlockSpec((1, Bo, Wo, Cout), lambda n, b: (n, b, 0, 0)),
            scratch_shapes=[pltpu.VMEM((p, W, Cexp), jnp.float32)],
        ),
        compiler_params=pltpu.CompilerParams(
            dimension_semantics=("parallel", "arbitrary")),
    )(*operands)


def inverted_residual_forward(x_nchw, params, *, kernel_size, stride):
    """PyTorch-parity entry point (NCHW in/out). Prefer the NHWC entry point
    when stacking blocks so the transposes are not paid per block."""
    x = jnp.transpose(x_nchw, (0, 2, 3, 1))
    out = inverted_residual_forward_nhwc(x, params, kernel_size=kernel_size,
                                         stride=stride)
    return jnp.transpose(out, (0, 3, 1, 2))


# ----------------------------------------------------------------------------
# Pure-JAX reference (lax.conv) for correctness checking
# ----------------------------------------------------------------------------
def reference_forward(x_nchw, params, *, kernel_size, stride):
    dn = ("NHWC", "HWIO", "NHWC")
    x = jnp.transpose(x_nchw, (0, 2, 3, 1))
    Cin = x.shape[-1]

    w1 = params["w1"][None, None]
    s1, b1 = fold_bn(*params["bn1"])
    h = jax.lax.conv_general_dilated(x, w1, (1, 1), "VALID", dimension_numbers=dn)
    h = jnp.maximum(h * s1 + b1, 0.0)

    Cexp = h.shape[-1]
    wdw = params["w_dw"][:, :, :, None].transpose(0, 1, 3, 2)
    s2, b2 = fold_bn(*params["bn2"])
    pad = kernel_size // 2
    h = jax.lax.conv_general_dilated(h, wdw, (stride, stride),
                                     [(pad, pad), (pad, pad)],
                                     dimension_numbers=dn,
                                     feature_group_count=Cexp)
    h = jnp.maximum(h * s2 + b2, 0.0)

    w3 = params["w3"][None, None]
    s3, b3 = fold_bn(*params["bn3"])
    out = jax.lax.conv_general_dilated(h, w3, (1, 1), "VALID", dimension_numbers=dn)
    out = out * s3 + b3
    Cout = out.shape[-1]

    if stride == 1:
        if Cin != Cout:
            wsc = params["wsc"][None, None]
            ssc, bsc = fold_bn(*params["bnsc"])
            sc = jax.lax.conv_general_dilated(x, wsc, (1, 1), "VALID",
                                              dimension_numbers=dn)
            sc = sc * ssc + bsc
        else:
            sc = x
        out = out + sc
    return jnp.transpose(out, (0, 3, 1, 2))


# ----------------------------------------------------------------------------
if __name__ == "__main__":
    key = jax.random.PRNGKey(0)

    def bn_params(k, c):
        k1, k2, k3, k4 = jax.random.split(k, 4)
        gamma = 0.5 + jax.random.uniform(k1, (c,), jnp.float32)
        beta = 0.1 * jax.random.normal(k2, (c,), jnp.float32)
        mean = 0.1 * jax.random.normal(k3, (c,), jnp.float32)
        var = 0.5 + jax.random.uniform(k4, (c,), jnp.float32)
        return (gamma, beta, mean, var)

    def make_params(key, ks, cin, cexp, cout):
        keys = jax.random.split(key, 8)
        return {
            "w1":  0.2 * jax.random.normal(keys[0], (cin, cexp), jnp.float32),
            "bn1": bn_params(keys[1], cexp),
            "w_dw": 0.2 * jax.random.normal(keys[2], (ks, ks, cexp), jnp.float32),
            "bn2": bn_params(keys[3], cexp),
            "w3":  0.2 * jax.random.normal(keys[4], (cexp, cout), jnp.float32),
            "bn3": bn_params(keys[5], cout),
            "wsc": 0.2 * jax.random.normal(keys[6], (cin, cout), jnp.float32),
            "bnsc": bn_params(keys[7], cout),
        }

    N, H, W = 2, 16, 16
    # (kernel_size, in, expand, out, stride):
    #   conv shortcut / identity (direct-add) shortcut / stride-2 (no shortcut)
    configs = [
        (3, 4, 8, 8, 1),
        (3, 8, 16, 8, 1),
        (3, 8, 16, 16, 2),
    ]

    for idx, (ks, cin, cexp, cout, stride) in enumerate(configs):
        kp, kx = jax.random.split(jax.random.fold_in(key, idx))
        params = make_params(kp, ks, cin, cexp, cout)
        x = jax.random.normal(kx, (N, cin, H, W), jnp.float32)  # NCHW like PyTorch

        out = inverted_residual_forward(x, params, kernel_size=ks, stride=stride)
        out = jax.block_until_ready(out)
        ref = reference_forward(x, params, kernel_size=ks, stride=stride)
        ref = jax.block_until_ready(ref)

        assert out.shape == ref.shape, (out.shape, ref.shape)
        err = float(jnp.max(jnp.abs(out - ref)))
        assert jnp.allclose(out, ref, atol=1e-4, rtol=1e-4), (idx, err)

    print("KERNEL_OK")
</pallas_src>

<mosaic_0001>
module attributes {stable_mosaic.version = 11 : i64} {
  func.func @_fused_kernel(%arg0: i32, %arg1: i32, %arg2: memref<1x8x16x4xf32, #tpu.memory_space<vmem>>, %arg3: memref<1x8x16x4xf32, #tpu.memory_space<vmem>>, %arg4: memref<4x8xf32, #tpu.memory_space<vmem>>, %arg5: memref<1x8xf32, #tpu.memory_space<vmem>>, %arg6: memref<3x3x8xf32, #tpu.memory_space<vmem>>, %arg7: memref<1x8xf32, #tpu.memory_space<vmem>>, %arg8: memref<8x8xf32, #tpu.memory_space<vmem>>, %arg9: memref<1x8xf32, #tpu.memory_space<vmem>>, %arg10: memref<4x8xf32, #tpu.memory_space<vmem>>, %arg11: memref<1x8xf32, #tpu.memory_space<vmem>>, %arg12: memref<1x8x16x8xf32, #tpu.memory_space<vmem>>, %arg13: memref<1x16x8xf32, #tpu.memory_space<vmem>>) attributes {dimension_semantics = [#tpu.dimension_semantics<parallel>, #tpu.dimension_semantics<arbitrary>], iteration_bounds = array<i64: 2, 2>, scalar_prefetch = 0 : i64, scratch_operands = 1 : i64, tpu.core_type = #tpu.core_type<tc>, window_params = [{transform_indices = @transform_0, window_bounds = array<i64: 1, 8, 16, 4>}, {transform_indices = @transform_1, window_bounds = array<i64: 1, 8, 16, 4>}, {pipeline_mode = #tpu.pipeline_mode<synchronous>, transform_indices = @transform_2, window_bounds = array<i64: 4, 8>}, {pipeline_mode = #tpu.pipeline_mode<synchronous>, transform_indices = @transform_3, window_bounds = array<i64: 1, 8>}, {pipeline_mode = #tpu.pipeline_mode<synchronous>, transform_indices = @transform_4, window_bounds = array<i64: 3, 3, 8>}, {pipeline_mode = #tpu.pipeline_mode<synchronous>, transform_indices = @transform_5, window_bounds = array<i64: 1, 8>}, {pipeline_mode = #tpu.pipeline_mode<synchronous>, transform_indices = @transform_6, window_bounds = array<i64: 8, 8>}, {pipeline_mode = #tpu.pipeline_mode<synchronous>, transform_indices = @transform_7, window_bounds = array<i64: 1, 8>}, {pipeline_mode = #tpu.pipeline_mode<synchronous>, transform_indices = @transform_8, window_bounds = array<i64: 4, 8>}, {pipeline_mode = #tpu.pipeline_mode<synchronous>, transform_indices = @transform_9, window_bounds = array<i64: 1, 8>}, {transform_indices = @transform_10, window_bounds = array<i64: 1, 8, 16, 8>}]} {
    %c0 = arith.constant 0 : index
    %c0_0 = arith.constant 0 : index
    %c0_1 = arith.constant 0 : index
    %0 = vector.load %arg13[%c0, %c0_0, %c0_1] : memref<1x16x8xf32, #tpu.memory_space<vmem>>, vector<1x16x8xf32>
    %c0_2 = arith.constant 0 : index
    %c0_3 = arith.constant 0 : index
    %c0_4 = arith.constant 0 : index
    %c0_5 = arith.constant 0 : index
    %1 = vector.load %arg2[%c0_2, %c0_3, %c0_4, %c0_5] : memref<1x8x16x4xf32, #tpu.memory_space<vmem>>, vector<1x8x16x4xf32>
    %2 = vector.shape_cast %1 : vector<1x8x16x4xf32> to vector<8x16x4xf32>
    %c0_6 = arith.constant 0 : index
    %c0_7 = arith.constant 0 : index
    %c0_8 = arith.constant 0 : index
    %c0_9 = arith.constant 0 : index
    %3 = vector.load %arg3[%c0_6, %c0_7, %c0_8, %c0_9] : memref<1x8x16x4xf32, #tpu.memory_space<vmem>>, vector<1x1x16x4xf32>
    %4 = vector.shape_cast %3 : vector<1x1x16x4xf32> to vector<1x16x4xf32>
    %5 = tpu.concatenate %2, %4 in 0 : vector<8x16x4xf32>, vector<1x16x4xf32> -> vector<9x16x4xf32>
    %6 = vector.shape_cast %5 : vector<9x16x4xf32> to vector<144x4xf32>
    %c0_10 = arith.constant 0 : index
    %c0_11 = arith.constant 0 : index
    %7 = vector.load %arg4[%c0_10, %c0_11] : memref<4x8xf32, #tpu.memory_space<vmem>>, vector<4x8xf32>
    %cst = arith.constant dense<0.000000e+00> : vector<144x8xf32>
    %8 = tpu.matmul %6, %7, %cst {dimension_numbers = #tpu.dot_dimension_numbers<[1], [0], [0], [1], [0, 0, 1, 1], [], []>} : vector<144x4xf32>, vector<4x8xf32>, vector<144x8xf32> -> vector<144x8xf32>
    %c0_12 = arith.constant 0 : index
    %c0_13 = arith.constant 0 : index
    %9 = vector.load %arg5[%c0_12, %c0_13] : memref<1x8xf32, #tpu.memory_space<vmem>>, vector<1x8xf32>
    %10 = vector.broadcast %9 : vector<1x8xf32> to vector<144x8xf32>
    %11 = arith.addf %8, %10 : vector<144x8xf32>
    %cst_14 = arith.constant 0.000000e+00 : f32
    %12 = vector.broadcast %cst_14 : f32 to vector<144x8xf32>
    %13 = arith.maximumf %11, %12 : vector<144x8xf32>
    %14 = vector.shape_cast %13 : vector<144x8xf32> to vector<9x16x8xf32>
    %15 = vector.extract_strided_slice %14 {offsets = [0, 0, 0], sizes = [8, 16, 8], strides = [1, 1, 1]} : vector<9x16x8xf32> to vector<8x16x8xf32>
    %16 = vector.extract_strided_slice %15 {offsets = [7, 0, 0], sizes = [1, 16, 8], strides = [1, 1, 1]} : vector<8x16x8xf32> to vector<1x16x8xf32>
    %c0_15 = arith.constant 0 : index
    %c0_16 = arith.constant 0 : index
    %c0_17 = arith.constant 0 : index
    %17 = vector.load %arg13[%c0_15, %c0_16, %c0_17] : memref<1x16x8xf32, #tpu.memory_space<vmem>>, vector<1x16x8xf32>
    tpu.vector_store %arg13[%c0_15, %c0_16, %c0_17], %16 {strides = array<i32>} : memref<1x16x8xf32, #tpu.memory_space<vmem>>, vector<1x16x8xf32>,
    %c0_i32 = arith.constant 0 : i32
    %18 = arith.cmpi eq, %arg1, %c0_i32 : i32
    %cst_18 = arith.constant 0.000000e+00 : f32
    %19 = vector.broadcast %cst_18 : f32 to vector<1x16x8xf32>
    %20 = arith.select %18, %19, %0 : vector<1x16x8xf32>
    %c1_i32 = arith.constant 1 : i32
    %21 = arith.cmpi eq, %arg1, %c1_i32 : i32
    %22 = vector.extract_strided_slice %14 {offsets = [8, 0, 0], sizes = [1, 16, 8], strides = [1, 1, 1]} : vector<9x16x8xf32> to vector<1x16x8xf32>
    %cst_19 = arith.constant 0.000000e+00 : f32
    %23 = vector.broadcast %cst_19 : f32 to vector<1x16x8xf32>
    %24 = arith.select %21, %23, %22 : vector<1x16x8xf32>
    %25 = tpu.concatenate %20, %15, %24 in 0 : vector<1x16x8xf32>, vector<8x16x8xf32>, vector<1x16x8xf32> -> vector<10x16x8xf32>
    %cst_20 = arith.constant 0.000000e+00 : f32
    %26 = vector.broadcast %cst_20 : f32 to vector<10x1x8xf32>
    %27 = tpu.concatenate %26, %25, %26 in 1 : vector<10x1x8xf32>, vector<10x16x8xf32>, vector<10x1x8xf32> -> vector<10x18x8xf32>
    %c0_21 = arith.constant 0 : index
    %c0_22 = arith.constant 0 : index
    %c0_23 = arith.constant 0 : index
    %28 = vector.load %arg6[%c0_21, %c0_22, %c0_23] : memref<3x3x8xf32, #tpu.memory_space<vmem>>, vector<3x3x8xf32>
    %cst_24 = arith.constant 0.000000e+00 : f32
    %29 = vector.broadcast %cst_24 : f32 to vector<8x16x8xf32>
    %30 = vector.extract_strided_slice %27 {offsets = [0, 0, 0], sizes = [8, 16, 8], strides = [1, 1, 1]} : vector<10x18x8xf32> to vector<8x16x8xf32>
    %31 = vector.extract_strided_slice %28 {offsets = [0, 0, 0], sizes = [1, 1, 8], strides = [1, 1, 1]} : vector<3x3x8xf32> to vector<1x1x8xf32>
    %32 = vector.shape_cast %31 : vector<1x1x8xf32> to vector<8xf32>
    %33 = vector.shape_cast %32 : vector<8xf32> to vector<1x1x8xf32>
    %34 = vector.broadcast %33 : vector<1x1x8xf32> to vector<8x16x8xf32>
    %35 = arith.mulf %30, %34 : vector<8x16x8xf32>
    %36 = arith.addf %29, %35 : vector<8x16x8xf32>
    %37 = vector.extract_strided_slice %27 {offsets = [0, 1, 0], sizes = [8, 16, 8], strides = [1, 1, 1]} : vector<10x18x8xf32> to vector<8x16x8xf32>
    %38 = vector.extract_strided_slice %28 {offsets = [0, 1, 0], sizes = [1, 1, 8], strides = [1, 1, 1]} : vector<3x3x8xf32> to vector<1x1x8xf32>
    %39 = vector.shape_cast %38 : vector<1x1x8xf32> to vector<8xf32>
    %40 = vector.shape_cast %39 : vector<8xf32> to vector<1x1x8xf32>
    %41 = vector.broadcast %40 : vector<1x1x8xf32> to vector<8x16x8xf32>
    %42 = arith.mulf %37, %41 : vector<8x16x8xf32>
    %43 = arith.addf %36, %42 : vector<8x16x8xf32>
    %44 = vector.extract_strided_slice %27 {offsets = [0, 2, 0], sizes = [8, 16, 8], strides = [1, 1, 1]} : vector<10x18x8xf32> to vector<8x16x8xf32>
    %45 = vector.extract_strided_slice %28 {offsets = [0, 2, 0], sizes = [1, 1, 8], strides = [1, 1, 1]} : vector<3x3x8xf32> to vector<1x1x8xf32>
    %46 = vector.shape_cast %45 : vector<1x1x8xf32> to vector<8xf32>
    %47 = vector.shape_cast %46 : vector<8xf32> to vector<1x1x8xf32>
    %48 = vector.broadcast %47 : vector<1x1x8xf32> to vector<8x16x8xf32>
    %49 = arith.mulf %44, %48 : vector<8x16x8xf32>
    %50 = arith.addf %43, %49 : vector<8x16x8xf32>
    %51 = vector.extract_strided_slice %27 {offsets = [1, 0, 0], sizes = [8, 16, 8], strides = [1, 1, 1]} : vector<10x18x8xf32> to vector<8x16x8xf32>
    %52 = vector.extract_strided_slice %28 {offsets = [1, 0, 0], sizes = [1, 1, 8], strides = [1, 1, 1]} : vector<3x3x8xf32> to vector<1x1x8xf32>
    %53 = vector.shape_cast %52 : vector<1x1x8xf32> to vector<8xf32>
    %54 = vector.shape_cast %53 : vector<8xf32> to vector<1x1x8xf32>
    %55 = vector.broadcast %54 : vector<1x1x8xf32> to vector<8x16x8xf32>
    %56 = arith.mulf %51, %55 : vector<8x16x8xf32>
    %57 = arith.addf %50, %56 : vector<8x16x8xf32>
    %58 = vector.extract_strided_slice %27 {offsets = [1, 1, 0], sizes = [8, 16, 8], strides = [1, 1, 1]} : vector<10x18x8xf32> to vector<8x16x8xf32>
    %59 = vector.extract_strided_slice %28 {offsets = [1, 1, 0], sizes = [1, 1, 8], strides = [1, 1, 1]} : vector<3x3x8xf32> to vector<1x1x8xf32>
    %60 = vector.shape_cast %59 : vector<1x1x8xf32> to vector<8xf32>
    %61 = vector.shape_cast %60 : vector<8xf32> to vector<1x1x8xf32>
    %62 = vector.broadcast %61 : vector<1x1x8xf32> to vector<8x16x8xf32>
    %63 = arith.mulf %58, %62 : vector<8x16x8xf32>
    %64 = arith.addf %57, %63 : vector<8x16x8xf32>
    %65 = vector.extract_strided_slice %27 {offsets = [1, 2, 0], sizes = [8, 16, 8], strides = [1, 1, 1]} : vector<10x18x8xf32> to vector<8x16x8xf32>
    %66 = vector.extract_strided_slice %28 {offsets = [1, 2, 0], sizes = [1, 1, 8], strides = [1, 1, 1]} : vector<3x3x8xf32> to vector<1x1x8xf32>
    %67 = vector.shape_cast %66 : vector<1x1x8xf32> to vector<8xf32>
    %68 = vector.shape_cast %67 : vector<8xf32> to vector<1x1x8xf32>
    %69 = vector.broadcast %68 : vector<1x1x8xf32> to vector<8x16x8xf32>
    %70 = arith.mulf %65, %69 : vector<8x16x8xf32>
    %71 = arith.addf %64, %70 : vector<8x16x8xf32>
    %72 = vector.extract_strided_slice %27 {offsets = [2, 0, 0], sizes = [8, 16, 8], strides = [1, 1, 1]} : vector<10x18x8xf32> to vector<8x16x8xf32>
    %73 = vector.extract_strided_slice %28 {offsets = [2, 0, 0], sizes = [1, 1, 8], strides = [1, 1, 1]} : vector<3x3x8xf32> to vector<1x1x8xf32>
    %74 = vector.shape_cast %73 : vector<1x1x8xf32> to vector<8xf32>
    %75 = vector.shape_cast %74 : vector<8xf32> to vector<1x1x8xf32>
    %76 = vector.broadcast %75 : vector<1x1x8xf32> to vector<8x16x8xf32>
    %77 = arith.mulf %72, %76 : vector<8x16x8xf32>
    %78 = arith.addf %71, %77 : vector<8x16x8xf32>
    %79 = vector.extract_strided_slice %27 {offsets = [2, 1, 0], sizes = [8, 16, 8], strides = [1, 1, 1]} : vector<10x18x8xf32> to vector<8x16x8xf32>
    %80 = vector.extract_strided_slice %28 {offsets = [2, 1, 0], sizes = [1, 1, 8], strides = [1, 1, 1]} : vector<3x3x8xf32> to vector<1x1x8xf32>
    %81 = vector.shape_cast %80 : vector<1x1x8xf32> to vector<8xf32>
    %82 = vector.shape_cast %81 : vector<8xf32> to vector<1x1x8xf32>
    %83 = vector.broadcast %82 : vector<1x1x8xf32> to vector<8x16x8xf32>
    %84 = arith.mulf %79, %83 : vector<8x16x8xf32>
    %85 = arith.addf %78, %84 : vector<8x16x8xf32>
    %86 = vector.extract_strided_slice %27 {offsets = [2, 2, 0], sizes = [8, 16, 8], strides = [1, 1, 1]} : vector<10x18x8xf32> to vector<8x16x8xf32>
    %87 = vector.extract_strided_slice %28 {offsets = [2, 2, 0], sizes = [1, 1, 8], strides = [1, 1, 1]} : vector<3x3x8xf32> to vector<1x1x8xf32>
    %88 = vector.shape_cast %87 : vector<1x1x8xf32> to vector<8xf32>
    %89 = vector.shape_cast %88 : vector<8xf32> to vector<1x1x8xf32>
    %90 = vector.broadcast %89 : vector<1x1x8xf32> to vector<8x16x8xf32>
    %91 = arith.mulf %86, %90 : vector<8x16x8xf32>
    %92 = arith.addf %85, %91 : vector<8x16x8xf32>
    %c0_25 = arith.constant 0 : index
    %c0_26 = arith.constant 0 : index
    %93 = vector.load %arg7[%c0_25, %c0_26] : memref<1x8xf32, #tpu.memory_space<vmem>>, vector<1x8xf32>
    %94 = vector.shape_cast %93 : vector<1x8xf32> to vector<1x1x8xf32>
    %95 = vector.broadcast %94 : vector<1x1x8xf32> to vector<8x16x8xf32>
    %96 = arith.addf %92, %95 : vector<8x16x8xf32>
    %cst_27 = arith.constant 0.000000e+00 : f32
    %97 = vector.broadcast %cst_27 : f32 to vector<8x16x8xf32>
    %98 = arith.maximumf %96, %97 : vector<8x16x8xf32>
    %99 = vector.shape_cast %98 : vector<8x16x8xf32> to vector<128x8xf32>
    %c0_28 = arith.constant 0 : index
    %c0_29 = arith.constant 0 : index
    %100 = vector.load %arg8[%c0_28, %c0_29] : memref<8x8xf32, #tpu.memory_space<vmem>>, vector<8x8xf32>
    %cst_30 = arith.constant dense<0.000000e+00> : vector<128x8xf32>
    %101 = tpu.matmul %99, %100, %cst_30 {dimension_numbers = #tpu.dot_dimension_numbers<[1], [0], [0], [1], [0, 0, 1, 1], [], []>} : vector<128x8xf32>, vector<8x8xf32>, vector<128x8xf32> -> vector<128x8xf32>
    %c0_31 = arith.constant 0 : index
    %c0_32 = arith.constant 0 : index
    %102 = vector.load %arg9[%c0_31, %c0_32] : memref<1x8xf32, #tpu.memory_space<vmem>>, vector<1x8xf32>
    %103 = vector.broadcast %102 : vector<1x8xf32> to vector<128x8xf32>
    %104 = arith.addf %101, %103 : vector<128x8xf32>
    %105 = vector.shape_cast %2 : vector<8x16x4xf32> to vector<128x4xf32>
    %c0_33 = arith.constant 0 : index
    %c0_34 = arith.constant 0 : index
    %106 = vector.load %arg10[%c0_33, %c0_34] : memref<4x8xf32, #tpu.memory_space<vmem>>, vector<4x8xf32>
    %cst_35 = arith.constant dense<0.000000e+00> : vector<128x8xf32>
    %107 = tpu.matmul %105, %106, %cst_35 {dimension_numbers = #tpu.dot_dimension_numbers<[1], [0], [0], [1], [0, 0, 1, 1], [], []>} : vector<128x4xf32>, vector<4x8xf32>, vector<128x8xf32> -> vector<128x8xf32>
    %108 = arith.addf %104, %107 : vector<128x8xf32>
    %c0_36 = arith.constant 0 : index
    %c0_37 = arith.constant 0 : index
    %109 = vector.load %arg11[%c0_36, %c0_37] : memref<1x8xf32, #tpu.memory_space<vmem>>, vector<1x8xf32>
    %110 = vector.broadcast %109 : vector<1x8xf32> to vector<128x8xf32>
    %111 = arith.addf %108, %110 : vector<128x8xf32>
    %112 = vector.shape_cast %111 : vector<128x8xf32> to vector<1x8x16x8xf32>
    %c0_38 = arith.constant 0 : index
    %c0_39 = arith.constant 0 : index
    %c0_40 = arith.constant 0 : index
    %c0_41 = arith.constant 0 : index
    %113 = vector.load %arg12[%c0_38, %c0_39, %c0_40, %c0_41] : memref<1x8x16x8xf32, #tpu.memory_space<vmem>>, vector<1x8x16x8xf32>
    tpu.vector_store %arg12[%c0_38, %c0_39, %c0_40, %c0_41], %112 {strides = array<i32>} : memref<1x8x16x8xf32, #tpu.memory_space<vmem>>, vector<1x8x16x8xf32>,
    return
  }
  func.func @transform_0(%arg0: i32, %arg1: i32) -> (i32, i32, i32, i32) {
    %c0_i32 = arith.constant 0 : i32
    %c0_i32_0 = arith.constant 0 : i32
    %c0_i32_1 = arith.constant 0 : i32
    return %arg0, %arg1, %c0_i32, %c0_i32_0 : i32, i32, i32, i32
  }
  func.func @transform_1(%arg0: i32, %arg1: i32) -> (i32, i32, i32, i32) {
    %c1_i32 = arith.constant 1 : i32
    %0 = arith.addi %arg1, %c1_i32 : i32
    %c1_i32_0 = arith.constant 1 : i32
    %1 = arith.minsi %0, %c1_i32_0 : i32
    %c0_i32 = arith.constant 0 : i32
    %c0_i32_1 = arith.constant 0 : i32
    %c0_i32_2 = arith.constant 0 : i32
    return %arg0, %1, %c0_i32, %c0_i32_1 : i32, i32, i32, i32
  }
  func.func @transform_2(%arg0: i32, %arg1: i32) -> (i32, i32) {
    %c0_i32 = arith.constant 0 : i32
    %c0_i32_0 = arith.constant 0 : i32
    %c0_i32_1 = arith.constant 0 : i32
    return %c0_i32, %c0_i32_0 : i32, i32
  }
  func.func @transform_3(%arg0: i32, %arg1: i32) -> (i32, i32) {
    %c0_i32 = arith.constant 0 : i32
    %c0_i32_0 = arith.constant 0 : i32
    %c0_i32_1 = arith.constant 0 : i32
    return %c0_i32, %c0_i32_0 : i32, i32
  }
  func.func @transform_4(%arg0: i32, %arg1: i32) -> (i32, i32, i32) {
    %c0_i32 = arith.constant 0 : i32
    %c0_i32_0 = arith.constant 0 : i32
    %c0_i32_1 = arith.constant 0 : i32
    %c0_i32_2 = arith.constant 0 : i32
    return %c0_i32, %c0_i32_0, %c0_i32_1 : i32, i32, i32
  }
  func.func @transform_5(%arg0: i32, %arg1: i32) -> (i32, i32) {
    %c0_i32 = arith.constant 0 : i32
    %c0_i32_0 = arith.constant 0 : i32
    %c0_i32_1 = arith.constant 0 : i32
    return %c0_i32, %c0_i32_0 : i32, i32
  }
  func.func @transform_6(%arg0: i32, %arg1: i32) -> (i32, i32) {
    %c0_i32 = arith.constant 0 : i32
    %c0_i32_0 = arith.constant 0 : i32
    %c0_i32_1 = arith.constant 0 : i32
    return %c0_i32, %c0_i32_0 : i32, i32
  }
  func.func @transform_7(%arg0: i32, %arg1: i32) -> (i32, i32) {
    %c0_i32 = arith.constant 0 : i32
    %c0_i32_0 = arith.constant 0 : i32
    %c0_i32_1 = arith.constant 0 : i32
    return %c0_i32, %c0_i32_0 : i32, i32
  }
  func.func @transform_8(%arg0: i32, %arg1: i32) -> (i32, i32) {
    %c0_i32 = arith.constant 0 : i32
    %c0_i32_0 = arith.constant 0 : i32
    %c0_i32_1 = arith.constant 0 : i32
    return %c0_i32, %c0_i32_0 : i32, i32
  }
  func.func @transform_9(%arg0: i32, %arg1: i32) -> (i32, i32) {
    %c0_i32 = arith.constant 0 : i32
    %c0_i32_0 = arith.constant 0 : i32
    %c0_i32_1 = arith.constant 0 : i32
    return %c0_i32, %c0_i32_0 : i32, i32
  }
  func.func @transform_10(%arg0: i32, %arg1: i32) -> (i32, i32, i32, i32) {
    %c0_i32 = arith.constant 0 : i32
    %c0_i32_0 = arith.constant 0 : i32
    %c0_i32_1 = arith.constant 0 : i32
    return %arg0, %arg1, %c0_i32, %c0_i32_0 : i32, i32, i32, i32
  }
}

</mosaic_0001>

<llo_original>
// kernel: tpu_custom_call.1
$region0: #{tpu_custom_call.1}
  #allocation0 [shape = 'u32[]', space=smem, size = 0x4, offset = 0x4, fixed_abs, tag = 'smem constant byte address 0x4 - core index']
  #allocation1 [shape = 'u32[144,128]{1,0:T(1,128)}', space=vmem, size = 0x12000, scoped, tag = 'internal scratch']
  #allocation2 [shape = 'f32[1,16,8]{2,1,0:T(8,128)}', space=vmem, size = 0x2000, scoped, tag = 'scratch operand']
  %s0 = inlined_call_operand.vmem [shape: f32[2,16,16,4], index: 0, kind: input, shape index: {}]
  %s1 = inlined_call_operand.vmem [shape: f32[2,16,16,4], index: 1, kind: input, shape index: {}]
  %s2 = inlined_call_operand.vmem [shape: f32[4,8], index: 2, kind: input, shape index: {}]
  %s3 = inlined_call_operand.vmem [shape: f32[1,8], index: 3, kind: input, shape index: {}]
  %s4 = inlined_call_operand.vmem [shape: f32[3,3,8], index: 4, kind: input, shape index: {}]
  %s5 = inlined_call_operand.vmem [shape: f32[1,8], index: 5, kind: input, shape index: {}]
  %s6 = inlined_call_operand.vmem [shape: f32[8,8], index: 6, kind: input, shape index: {}]
  %s7 = inlined_call_operand.vmem [shape: f32[1,8], index: 7, kind: input, shape index: {}]
  %s8 = inlined_call_operand.vmem [shape: f32[4,8], index: 8, kind: input, shape index: {}]
  %s9 = inlined_call_operand.vmem [shape: f32[1,8], index: 9, kind: input, shape index: {}]
  %s10 = inlined_call_operand.vmem [shape: f32[2,16,16,8], index: 10, kind: output, shape index: {}]
  %s11 = sld [smem:[#allocation0]]
  $region73: #{tpu_custom_call.1} parent=0
    _
  %s13 = ssub.s32 1, %s11
  %s14 = scalar_select 0, %s13, %s11
  loop: start=0, step=1, limit=6
  $region2: #{tpu_custom_call.1} parent=0 // loop_pre_header
    _
  $region3: #{tpu_custom_call.1} parent=0 // loop_header
    %s16 = sphi 0, %s20
    %p17 = scmp.ge.s32.totalorder %s16, 6
    %s23 = sphi 0, %s35
    %s24 = sphi 0, %s31
    %s25 = sphi 0, %s23
    %s26 = sphi 0, %s24
    %s27 = sphi 0, %s25
    %s28 = sphi 0, %s26
    %s40 = sphi 0, %s42
    %s43 = sphi 0, %s40
    %s44 = sphi 0, %s43
    %s60 = sphi 0, %s44
    %s74 = sphi 0, %s76
    %s77 = sphi 0, %s74
    %s78 = sphi 0, %s77
    %s94 = sphi 0, %s78
    %s98 = sphi 0, %s98
    %s100 = sphi 0, %s98
    %s101 = sphi 0, %s100
    %s115 = sphi 0, %s101
    %s119 = sphi 0, %s119
    %s121 = sphi 0, %s119
    %s122 = sphi 0, %s121
    %s136 = sphi 0, %s122
    %s140 = sphi 0, %s140
    %s142 = sphi 0, %s140
    %s143 = sphi 0, %s142
    %s157 = sphi 0, %s143
    %s161 = sphi 0, %s161
    %s163 = sphi 0, %s161
    %s164 = sphi 0, %s163
    %s178 = sphi 0, %s164
    %s182 = sphi 0, %s182
    %s184 = sphi 0, %s182
    %s185 = sphi 0, %s184
    %s199 = sphi 0, %s185
    %s203 = sphi 0, %s203
    %s205 = sphi 0, %s203
    %s206 = sphi 0, %s205
    %s220 = sphi 0, %s206
    %s224 = sphi 0, %s224
    %s226 = sphi 0, %s224
    %s227 = sphi 0, %s226
    %s241 = sphi 0, %s227
    %s245 = sphi 0, %s245
    %s247 = sphi 0, %s245
    %s248 = sphi 0, %s247
    %s262 = sphi 0, %s248
    %s270 = sphi 0, %s272
    %s273 = sphi 0, %s270
    %s274 = sphi 0, %s273
    %s290 = sphi 0, %s274
  $region4: #{tpu_custom_call.1} parent=0 // loop_header_branch
    %19 = sbr.rel (%p17) target = $region8
  $region5: #{tpu_custom_call.1} parent=0 // loop_body
    %s21 = ssub.s32 %s16, 1
    %s22 = ssub.s32 %s16, 2
    %s29 = sadd.s32 1, %s24
    %p30 = scmp.ge.s32.totalorder %s29, 2
    %s31 = scalar_select %p30, 0, %s29
    %s32 = sadd.s32 1, %s23
    %s33 = scalar_select %p30, %s32, %s23
    %p34 = scmp.ge.s32.totalorder %s33, 2
    %s35 = scalar_select %p34, 0, %s33
    %s36 = ssub.s32 %s23, %s35
    %s37 = ssub.s32 %s24, %s31
    %s38 = sor.u32 %s36, %s37
    %p39 = scmp.eq.s32.totalorder %s38, 0
    %s41 = sadd.s32 %s40, 1
    %s42 = scalar_select %p39, %s40, %s41
    %p45 = pneg %p39
    %p46 = scmp.eq.s32.totalorder %s16, 3
    %p47 = por %p45, %p46
    %p48 = scmp.ne.s32.totalorder %s40, %s43
    %p49 = scmp.eq.s32.totalorder %s16, 0
    %p50 = por %p48, %p49
    %p51 = scmp.ne.s32.totalorder %s40, %s43
    %p52 = scmp.eq.s32.totalorder %s21, 3
    %p53 = por %p51, %p52
    %p54 = scmp.ne.s32.totalorder %s43, %s44
    %p55 = scmp.eq.s32.totalorder %s21, 0
    %p56 = por %p54, %p55
    %p57 = scmp.ne.s32.totalorder %s43, %s44
    %p58 = scmp.eq.s32.totalorder %s22, 3
    %p59 = por %p57, %p58
    %p61 = scmp.ne.s32.totalorder %s44, %s60
    %p62 = scmp.eq.s32.totalorder %s22, 0
    %p63 = por %p61, %p62
    %s64 = sadd.s32 %s24, 1
    %p65 = scmp.lt.s32.totalorder %s64, 1
    %s66 = scalar_select %p65, %s64, 1
    %s67 = sadd.s32 %s31, 1
    %p68 = scmp.lt.s32.totalorder %s67, 1
    %s69 = scalar_select %p68, %s67, 1
    %s70 = ssub.s32 %s23, %s35
    %s71 = ssub.s32 %s66, %s69
    %s72 = sor.u32 %s70, %s71
    %p73 = scmp.eq.s32.totalorder %s72, 0
    %s75 = sadd.s32 %s74, 1
    %s76 = scalar_select %p73, %s74, %s75
    %p79 = pneg %p73
    %p80 = scmp.eq.s32.totalorder %s16, 3
    %p81 = por %p79, %p80
    %p82 = scmp.ne.s32.totalorder %s74, %s77
    %p83 = scmp.eq.s32.totalorder %s16, 0
    %p84 = por %p82, %p83
    %p85 = scmp.ne.s32.totalorder %s74, %s77
    %p86 = scmp.eq.s32.totalorder %s21, 3
    %p87 = por %p85, %p86
    %p88 = scmp.ne.s32.totalorder %s77, %s78
    %p89 = scmp.eq.s32.totalorder %s21, 0
    %p90 = por %p88, %p89
    %p91 = scmp.ne.s32.totalorder %s77, %s78
    %p92 = scmp.eq.s32.totalorder %s22, 3
    %p93 = por %p91, %p92
    %p95 = scmp.ne.s32.totalorder %s78, %s94
    %p96 = scmp.eq.s32.totalorder %s22, 0
    %p97 = por %p95, %p96
    %s99 = sadd.s32 %s98, 1
    %p102 = scmp.eq.s32.totalorder %s16, 3
    %p103 = scmp.ne.s32.totalorder %s98, %s100
    %p104 = scmp.eq.s32.totalorder %s16, 0
    %p105 = por %p103, %p104
    %p106 = scmp.ne.s32.totalorder %s98, %s100
    %p107 = scmp.eq.s32.totalorder %s21, 3
    %p108 = por %p106, %p107
    %p109 = scmp.ne.s32.totalorder %s100, %s101
    %p110 = scmp.eq.s32.totalorder %s21, 0
    %p111 = por %p109, %p110
    %p112 = scmp.ne.s32.totalorder %s100, %s101
    %p113 = scmp.eq.s32.totalorder %s22, 3
    %p114 = por %p112, %p113
    %p116 = scmp.ne.s32.totalorder %s101, %s115
    %p117 = scmp.eq.s32.totalorder %s22, 0
    %p118 = por %p116, %p117
    %s120 = sadd.s32 %s119, 1
    %p123 = scmp.eq.s32.totalorder %s16, 3
    %p124 = scmp.ne.s32.totalorder %s119, %s121
    %p125 = scmp.eq.s32.totalorder %s16, 0
    %p126 = por %p124, %p125
    %p127 = scmp.ne.s32.totalorder %s119, %s121
    %p128 = scmp.eq.s32.totalorder %s21, 3
    %p129 = por %p127, %p128
    %p130 = scmp.ne.s32.totalorder %s121, %s122
    %p131 = scmp.eq.s32.totalorder %s21, 0
    %p132 = por %p130, %p131
    %p133 = scmp.ne.s32.totalorder %s121, %s122
    %p134 = scmp.eq.s32.totalorder %s22, 3
    %p135 = por %p133, %p134
    %p137 = scmp.ne.s32.totalorder %s122, %s136
    %p138 = scmp.eq.s32.totalorder %s22, 0
    %p139 = por %p137, %p138
    %s141 = sadd.s32 %s140, 1
    %p144 = scmp.eq.s32.totalorder %s16, 3
    %p145 = scmp.ne.s32.totalorder %s140, %s142
    %p146 = scmp.eq.s32.totalorder %s16, 0
    %p147 = por %p145, %p146
    %p148 = scmp.ne.s32.totalorder %s140, %s142
    %p149 = scmp.eq.s32.totalorder %s21, 3
    %p150 = por %p148, %p149
    %p151 = scmp.ne.s32.totalorder %s142, %s143
    %p152 = scmp.eq.s32.totalorder %s21, 0
    %p153 = por %p151, %p152
    %p154 = scmp.ne.s32.totalorder %s142, %s143
    %p155 = scmp.eq.s32.totalorder %s22, 3
    %p156 = por %p154, %p155
    %p158 = scmp.ne.s32.totalorder %s143, %s157
    %p159 = scmp.eq.s32.totalorder %s22, 0
    %p160 = por %p158, %p159
    %s162 = sadd.s32 %s161, 1
    %p165 = scmp.eq.s32.totalorder %s16, 3
    %p166 = scmp.ne.s32.totalorder %s161, %s163
    %p167 = scmp.eq.s32.totalorder %s16, 0
    %p168 = por %p166, %p167
    %p169 = scmp.ne.s32.totalorder %s161, %s163
    %p170 = scmp.eq.s32.totalorder %s21, 3
    %p171 = por %p169, %p170
    %p172 = scmp.ne.s32.totalorder %s163, %s164
    %p173 = scmp.eq.s32.totalorder %s21, 0
    %p174 = por %p172, %p173
    %p175 = scmp.ne.s32.totalorder %s163, %s164
    %p176 = scmp.eq.s32.totalorder %s22, 3
    %p177 = por %p175, %p176
    %p179 = scmp.ne.s32.totalorder %s164, %s178
    %p180 = scmp.eq.s32.totalorder %s22, 0
    %p181 = por %p179, %p180
    %s183 = sadd.s32 %s182, 1
    %p186 = scmp.eq.s32.totalorder %s16, 3
    %p187 = scmp.ne.s32.totalorder %s182, %s184
    %p188 = scmp.eq.s32.totalorder %s16, 0
    %p189 = por %p187, %p188
    %p190 = scmp.ne.s32.totalorder %s182, %s184
    %p191 = scmp.eq.s32.totalorder %s21, 3
    %p192 = por %p190, %p191
    %p193 = scmp.ne.s32.totalorder %s184, %s185
    %p194 = scmp.eq.s32.totalorder %s21, 0
    %p195 = por %p193, %p194
    %p196 = scmp.ne.s32.totalorder %s184, %s185
    %p197 = scmp.eq.s32.totalorder %s22, 3
    %p198 = por %p196, %p197
    %p200 = scmp.ne.s32.totalorder %s185, %s199
    %p201 = scmp.eq.s32.totalorder %s22, 0
    %p202 = por %p200, %p201
    %s204 = sadd.s32 %s203, 1
    %p207 = scmp.eq.s32.totalorder %s16, 3
    %p208 = scmp.ne.s32.totalorder %s203, %s205
    %p209 = scmp.eq.s32.totalorder %s16, 0
    %p210 = por %p208, %p209
    %p211 = scmp.ne.s32.totalorder %s203, %s205
    %p212 = scmp.eq.s32.totalorder %s21, 3
    %p213 = por %p211, %p212
    %p214 = scmp.ne.s32.totalorder %s205, %s206
    %p215 = scmp.eq.s32.totalorder %s21, 0
    %p216 = por %p214, %p215
    %p217 = scmp.ne.s32.totalorder %s205, %s206
    %p218 = scmp.eq.s32.totalorder %s22, 3
    %p219 = por %p217, %p218
    %p221 = scmp.ne.s32.totalorder %s206, %s220
    %p222 = scmp.eq.s32.totalorder %s22, 0
    %p223 = por %p221, %p222
    %s225 = sadd.s32 %s224, 1
    %p228 = scmp.eq.s32.totalorder %s16, 3
    %p229 = scmp.ne.s32.totalorder %s224, %s226
    %p230 = scmp.eq.s32.totalorder %s16, 0
    %p231 = por %p229, %p230
    %p232 = scmp.ne.s32.totalorder %s224, %s226
    %p233 = scmp.eq.s32.totalorder %s21, 3
    %p234 = por %p232, %p233
    %p235 = scmp.ne.s32.totalorder %s226, %s227
    %p236 = scmp.eq.s32.totalorder %s21, 0
    %p237 = por %p235, %p236
    %p238 = scmp.ne.s32.totalorder %s226, %s227
    %p239 = scmp.eq.s32.totalorder %s22, 3
    %p240 = por %p238, %p239
    %p242 = scmp.ne.s32.totalorder %s227, %s241
    %p243 = scmp.eq.s32.totalorder %s22, 0
    %p244 = por %p242, %p243
    %s246 = sadd.s32 %s245, 1
    %p249 = scmp.eq.s32.totalorder %s16, 3
    %p250 = scmp.ne.s32.totalorder %s245, %s247
    %p251 = scmp.eq.s32.totalorder %s16, 0
    %p252 = por %p250, %p251
    %p253 = scmp.ne.s32.totalorder %s245, %s247
    %p254 = scmp.eq.s32.totalorder %s21, 3
    %p255 = por %p253, %p254
    %p256 = scmp.ne.s32.totalorder %s247, %s248
    %p257 = scmp.eq.s32.totalorder %s21, 0
    %p258 = por %p256, %p257
    %p259 = scmp.ne.s32.totalorder %s247, %s248
    %p260 = scmp.eq.s32.totalorder %s22, 3
    %p261 = por %p259, %p260
    %p263 = scmp.ne.s32.totalorder %s248, %s262
    %p264 = scmp.eq.s32.totalorder %s22, 0
    %p265 = por %p263, %p264
    %s266 = ssub.s32 %s23, %s35
    %s267 = ssub.s32 %s24, %s31
    %s268 = sor.u32 %s266, %s267
    %p269 = scmp.eq.s32.totalorder %s268, 0
    %s271 = sadd.s32 %s270, 1
    %s272 = scalar_select %p269, %s270, %s271
    %p275 = pneg %p269
    %p276 = scmp.eq.s32.totalorder %s16, 3
    %p277 = por %p275, %p276
    %p278 = scmp.ne.s32.totalorder %s270, %s273
    %p279 = scmp.eq.s32.totalorder %s16, 0
    %p280 = por %p278, %p279
    %p281 = scmp.ne.s32.totalorder %s270, %s273
    %p282 = scmp.eq.s32.totalorder %s21, 3
    %p283 = por %p281, %p282
    %p284 = scmp.ne.s32.totalorder %s273, %s274
    %p285 = scmp.eq.s32.totalorder %s21, 0
    %p286 = por %p284, %p285
    %p287 = scmp.ne.s32.totalorder %s273, %s274
    %p288 = scmp.eq.s32.totalorder %s22, 3
    %p289 = por %p287, %p288
    %p291 = scmp.ne.s32.totalorder %s274, %s290
    %p292 = scmp.eq.s32.totalorder %s22, 0
    %p293 = por %p291, %p292
    %p294 = scmp.le.s32.totalorder 1, %s16
    %p295 = scmp.lt.s32.totalorder %s16, 5
    %p296 = pnand %p294, %p295
    %p297 = pneg %p296
    // Predicated region
    $region9: #{tpu_custom_call.1} parent=5 // pred_check
      _
    $region10: #{tpu_custom_call.1} parent=5 // pred_check_branch
      %299 = sbr.rel (%p296) target = $region12
    $region11: #{tpu_custom_call.1} parent=5 // pred_region
      %s300 = ssub.s32 %s16, 1
      // Predicated region
      $region13: #{tpu_custom_call.1} parent=11 // pred_check
        %p301 = pneg %p111
      $region14: #{tpu_custom_call.1} parent=11 // pred_check_branch
        %303 = sbr.rel (%p301) target = $region16
      $region15: #{tpu_custom_call.1} parent=11 // pred_region
        _
      $region16: #{tpu_custom_call.1} parent=11 // pred_fallthru
        _
      // Predicated region
      $region17: #{tpu_custom_call.1} parent=11 // pred_check
        %p304 = pneg %p132
      $region18: #{tpu_custom_call.1} parent=11 // pred_check_branch
        %306 = sbr.rel (%p304) target = $region20
      $region19: #{tpu_custom_call.1} parent=11 // pred_region
        _
      $region20: #{tpu_custom_call.1} parent=11 // pred_fallthru
        _
      // Predicated region
      $region21: #{tpu_custom_call.1} parent=11 // pred_check
        %p307 = pneg %p153
      $region22: #{tpu_custom_call.1} parent=11 // pred_check_branch
        %309 = sbr.rel (%p307) target = $region24
      $region23: #{tpu_custom_call.1} parent=11 // pred_region
        _
      $region24: #{tpu_custom_call.1} parent=11 // pred_fallthru
        _
      // Predicated region
      $region25: #{tpu_custom_call.1} parent=11 // pred_check
        %p310 = pneg %p174
      $region26: #{tpu_custom_call.1} parent=11 // pred_check_branch
        %312 = sbr.rel (%p310) target = $region28
      $region27: #{tpu_custom_call.1} parent=11 // pred_region
        _
      $region28: #{tpu_custom_call.1} parent=11 // pred_fallthru
        _
      // Predicated region
      $region29: #{tpu_custom_call.1} parent=11 // pred_check
        %p313 = pneg %p195
      $region30: #{tpu_custom_call.1} parent=11 // pred_check_branch
        %315 = sbr.rel (%p313) target = $region32
      $region31: #{tpu_custom_call.1} parent=11 // pred_region
        _
      $region32: #{tpu_custom_call.1} parent=11 // pred_fallthru
        _
      // Predicated region
      $region33: #{tpu_custom_call.1} parent=11 // pred_check
        %p316 = pneg %p216
      $region34: #{tpu_custom_call.1} parent=11 // pred_check_branch
        %318 = sbr.rel (%p316) target = $region36
      $region35: #{tpu_custom_call.1} parent=11 // pred_region
        _
      $region36: #{tpu_custom_call.1} parent=11 // pred_fallthru
        _
      // Predicated region
      $region37: #{tpu_custom_call.1} parent=11 // pred_check
        %p319 = pneg %p237
      $region38: #{tpu_custom_call.1} parent=11 // pred_check_branch
        %321 = sbr.rel (%p319) target = $region40
      $region39: #{tpu_custom_call.1} parent=11 // pred_region
        _
      $region40: #{tpu_custom_call.1} parent=11 // pred_fallthru
        _
      // Predicated region
      $region41: #{tpu_custom_call.1} parent=11 // pred_check
        %p322 = pneg %p258
      $region42: #{tpu_custom_call.1} parent=11 // pred_check_branch
        %324 = sbr.rel (%p322) target = $region44
      $region43: #{tpu_custom_call.1} parent=11 // pred_region
        _
      $region44: #{tpu_custom_call.1} parent=11 // pred_fallthru
        _
    $region12: #{tpu_custom_call.1} parent=5 // pred_fallthru
      _
    %p325 = scmp.lt.s32.totalorder %s16, 4
    // Predicated region
    $region45: #{tpu_custom_call.1} parent=5 // pred_check
      %p326 = pneg %p325
    $region46: #{tpu_custom_call.1} parent=5 // pred_check_branch
      %328 = sbr.rel (%p326) target = $region48
    $region47: #{tpu_custom_call.1} parent=5 // pred_region
      // Predicated region
      $region49: #{tpu_custom_call.1} parent=47 // pred_check
        %p329 = pneg %p50
      $region50: #{tpu_custom_call.1} parent=47 // pred_check_branch
        %331 = sbr.rel (%p329) target = $region52
      $region51: #{tpu_custom_call.1} parent=47 // pred_region
        %s332 = smul.u32 8, %s24
        %p333 = scmp.lt.s32.totalorder %s23, 1
        %s334 = scalar_select %p333, %s23, 1
        %p335 = scmp.lt.s32.totalorder %s332, 15
        %s336 = scalar_select %p335, %s332, 15
        %s337 = smul.addr %s336, 2
        %s338 = smul.addr %s334, 32
        %s339 = sadd.s32 %s337, %s338
        %s340 = smul.addr %s339, 8
        %s341 = scalar_lea.vmem %s0, %s340
        %s342 = smul.u32 8, %s24
      $region52: #{tpu_custom_call.1} parent=47 // pred_fallthru
        _
      // Predicated region
      $region53: #{tpu_custom_call.1} parent=47 // pred_check
        %p343 = pneg %p84
      $region54: #{tpu_custom_call.1} parent=47 // pred_check_branch
        %345 = sbr.rel (%p343) target = $region56
      $region55: #{tpu_custom_call.1} parent=47 // pred_region
        %s346 = sadd.s32 %s24, 1
        %p347 = scmp.lt.s32.totalorder %s346, 1
        %s348 = scalar_select %p347, %s346, 1
        %s349 = smul.u32 8, %s348
        %p350 = scmp.lt.s32.totalorder %s23, 1
        %s351 = scalar_select %p350, %s23, 1
        %p352 = scmp.lt.s32.totalorder %s349, 15
        %s353 = scalar_select %p352, %s349, 15
        %s354 = smul.addr %s353, 2
        %s355 = smul.addr %s351, 32
        %s356 = sadd.s32 %s354, %s355
        %s357 = smul.addr %s356, 8
        %s358 = scalar_lea.vmem %s1, %s357
        %s359 = sadd.s32 %s24, 1
        %p360 = scmp.lt.s32.totalorder %s359, 1
        %s361 = scalar_select %p360, %s359, 1
        %s362 = smul.u32 8, %s361
      $region56: #{tpu_custom_call.1} parent=47 // pred_fallthru
        _
    $region48: #{tpu_custom_call.1} parent=5 // pred_fallthru
      _
    %p363 = scmp.le.s32.totalorder 1, %s16
    %p364 = scmp.lt.s32.totalorder %s16, 5
    %p365 = pnand %p363, %p364
    %p366 = pneg %p365
    // Predicated region
    $region57: #{tpu_custom_call.1} parent=5 // pred_check
      _
    $region58: #{tpu_custom_call.1} parent=5 // pred_check_branch
      %368 = sbr.rel (%p365) target = $region60
    $region59: #{tpu_custom_call.1} parent=5 // pred_region
      %s369 = ssub.s32 %s16, 1
      %s370 = smul.u32 8, %s26
      %p371 = scmp.lt.s32.totalorder %s25, 1
      %s372 = scalar_select %p371, %s25, 1
      %p373 = scmp.lt.s32.totalorder %s370, 15
      %s374 = scalar_select %p373, %s370, 15
      %s375 = smul.addr %s374, 2
      %s376 = smul.addr %s372, 32
      %s377 = sadd.s32 %s375, %s376
      %s378 = smul.addr %s377, 8
      %s379 = scalar_lea.vmem %s0, %s378
      %p380 = pneg %p56
      %p381 = pneg %p53
      %s382 = sadd.s32 %s26, 1
      %p383 = scmp.lt.s32.totalorder %s382, 1
      %s384 = scalar_select %p383, %s382, 1
      %s385 = smul.u32 8, %s384
      %p386 = scmp.lt.s32.totalorder %s25, 1
      %s387 = scalar_select %p386, %s25, 1
      %p388 = scmp.lt.s32.totalorder %s385, 15
      %s389 = scalar_select %p388, %s385, 15
      %s390 = smul.addr %s389, 2
      %s391 = smul.addr %s387, 32
      %s392 = sadd.s32 %s390, %s391
      %s393 = smul.addr %s392, 8
      %s394 = scalar_lea.vmem %s1, %s393
      %p395 = pneg %p90
      %p396 = pneg %p87
      %p397 = pneg %p111
      %p398 = pneg %p108
      %p399 = pneg %p132
      %p400 = pneg %p129
      %p401 = pneg %p153
      %p402 = pneg %p150
      %p403 = pneg %p174
      %p404 = pneg %p171
      %p405 = pneg %p195
      %p406 = pneg %p192
      %p407 = pneg %p216
      %p408 = pneg %p213
      %p409 = pneg %p237
      %p410 = pneg %p234
      %p411 = pneg %p258
      %p412 = pneg %p255
      %p413 = pneg %p286
      %p414 = pneg %p283
      %s415 = smul.u32 8, %s26
      %p416 = scmp.lt.s32.totalorder %s25, 1
      %s417 = scalar_select %p416, %s25, 1
      %p418 = scmp.lt.s32.totalorder %s415, 15
      %s419 = scalar_select %p418, %s415, 15
      %s420 = smul.addr %s419, 2
      %s421 = smul.addr %s417, 32
      %s422 = sadd.s32 %s420, %s421
      %s423 = smul.addr %s422, 8
      %s424 = scalar_lea.vmem %s10, %s423
      %s425 = smul.u32 8, %s26
      %p426 = scmp.lt.s32.totalorder %s25, 1
      %s427 = scalar_select %p426, %s25, 1
      %p428 = scmp.lt.s32.totalorder %s425, 15
      %s429 = scalar_select %p428, %s425, 15
      %s430 = smul.addr %s429, 2
      %s431 = smul.addr %s427, 32
      %s432 = sadd.s32 %s430, %s431
      %s433 = smul.addr %s432, 8
      %s434 = scalar_lea.vmem %s0, %s433
      %s435 = smul.u32 8, %s26
      %s436 = sadd.s32 %s26, 1
      %p437 = scmp.lt.s32.totalorder %s436, 1
      %s438 = scalar_select %p437, %s436, 1
      %s439 = smul.u32 8, %s438
      %p440 = scmp.lt.s32.totalorder %s25, 1
      %s441 = scalar_select %p440, %s25, 1
      %p442 = scmp.lt.s32.totalorder %s439, 15
      %s443 = scalar_select %p442, %s439, 15
      %s444 = smul.addr %s443, 2
      %s445 = smul.addr %s441, 32
      %s446 = sadd.s32 %s444, %s445
      %s447 = smul.addr %s446, 8
      %s448 = scalar_lea.vmem %s1, %s447
      %s449 = sadd.s32 %s26, 1
      %p450 = scmp.lt.s32.totalorder %s449, 1
      %s451 = scalar_select %p450, %s449, 1
      %s452 = smul.u32 8, %s451
      %s453 = smul.u32 8, %s26
      %p454 = scmp.lt.s32.totalorder %s25, 1
      %s455 = scalar_select %p454, %s25, 1
      %p456 = scmp.lt.s32.totalorder %s453, 15
      %s457 = scalar_select %p456, %s453, 15
      %s458 = smul.addr %s457, 2
      %s459 = smul.addr %s455, 32
      %s460 = sadd.s32 %s458, %s459
      %s461 = smul.addr %s460, 8
      %s462 = scalar_lea.vmem %s10, %s461
      %s463 = smul.u32 8, %s26
      %v464 = vld [vmem:[#allocation2] sm:$0xff]
      %v465 = vld [vmem:[#allocation2 + $0x8] sm:$0xff]
      %v466 = vld [vmem:[%s434] sm:$0xff]
      %v467 = vld [vmem:[%s434 + $0x8] sm:$0xff]
      %v468 = vld [vmem:[%s434 + $0x10] sm:$0xff]
      %v469 = vld [vmem:[%s434 + $0x18] sm:$0xff]
      %v470 = vld [vmem:[%s434 + $0x20] sm:$0xff]
      %v471 = vld [vmem:[%s434 + $0x28] sm:$0xff]
      %v472 = vld [vmem:[%s434 + $0x30] sm:$0xff]
      %v473 = vld [vmem:[%s434 + $0x38] sm:$0xff]
      %v474 = vld [vmem:[%s434 + $0x40] sm:$0xff]
      %v475 = vld [vmem:[%s434 + $0x48] sm:$0xff]
      %v476 = vld [vmem:[%s434 + $0x50] sm:$0xff]
      %v477 = vld [vmem:[%s434 + $0x58] sm:$0xff]
      %v478 = vld [vmem:[%s434 + $0x60] sm:$0xff]
      %v479 = vld [vmem:[%s434 + $0x68] sm:$0xff]
      %v480 = vld [vmem:[%s434 + $0x70] sm:$0xff]
      %v481 = vld [vmem:[%s434 + $0x78] sm:$0xff]
      %v482 = vld [vmem:[%s448] sm:$0xff]
      %v483 = vld [vmem:[%s448 + $0x8] sm:$0xff]
      %v484 = vld [vmem:[%s2] sm:$0xf]
      %v485 = vld [vmem:[%s3] sm:$0x1]
      %v487 = vlaneseq
      %v488 = vshrl.u32 %v487, 7
      %v489 = vsub.s32 0, %v488
      %v490 = vrot.slane %v485, %v489
      %vm492 = vcmask 31744
      %v494 = vsel %vm492, %v466, 0
      %v497 = vsel %vm492, %v467, 0
      %v500 = vsel %vm492, %v468, 0
      %v503 = vsel %vm492, %v469, 0
      %v506 = vsel %vm492, %v470, 0
      %v509 = vsel %vm492, %v471, 0
      %v512 = vsel %vm492, %v472, 0
      %v515 = vsel %vm492, %v473, 0
      %v518 = vsel %vm492, %v474, 0
      %v521 = vsel %vm492, %v475, 0
      %v524 = vsel %vm492, %v476, 0
      %v527 = vsel %vm492, %v477, 0
      %v530 = vsel %vm492, %v478, 0
      %v533 = vsel %vm492, %v479, 0
      %v536 = vsel %vm492, %v480, 0
      %v539 = vsel %vm492, %v481, 0
      %v542 = vsel %vm492, %v482, 0
      %v545 = vsel %vm492, %v483, 0
      %vm547 = vcmask 1043456
      %v549 = vsel %vm547, %v484, 0
      %551 = vmatprep.subr.mxu0 0.0
      %552 = vmatpush1.msra.mxu0 %v549
      %553 = vmatprep.subr.mxu0 0.0
      %554 = vmatpush1.msra.mxu0 0.0
      %555 = vmatprep.subr.mxu0 0.0
      %556 = vmatpush1.msra.mxu0 0.0
      %557 = vmatprep.subr.mxu0 0.0
      %558 = vmatpush1.msra.mxu0 0.0
      %559 = vmatprep.subr.mxu0 0.0
      %560 = vmatpush1.msra.mxu0 0.0
      %561 = vmatprep.subr.mxu0 0.0
      %562 = vmatpush1.msra.mxu0 0.0
      %563 = vmatprep.subr.mxu0 0.0
      %564 = vmatpush1.msra.mxu0 0.0
      %565 = vmatprep.subr.mxu0 0.0
      %566 = vmatpush1.msra.mxu0 0.0
      %567 = vmatprep.subr.mxu0 0.0
      %568 = vmatpush1.msra.mxu0 0.0
      %569 = vmatprep.subr.mxu0 0.0
      %570 = vmatpush1.msra.mxu0 0.0
      %571 = vmatprep.subr.mxu0 0.0
      %572 = vmatpush1.msra.mxu0 0.0
      %573 = vmatprep.subr.mxu0 0.0
      %574 = vmatpush1.msra.mxu0 0.0
      %575 = vmatprep.subr.mxu0 0.0
      %576 = vmatpush1.msra.mxu0 0.0
      %577 = vmatprep.subr.mxu0 0.0
      %578 = vmatpush1.msra.mxu0 0.0
      %579 = vmatprep.subr.mxu0 0.0
      %580 = vmatpush1.msra.mxu0 0.0
      %581 = vmatprep.subr.mxu0 0.0
      %582 = vmatpush1.msra.mxu0 0.0
      %583 = vmatprep.subr.mxu0 0.0
      %584 = vmatpush1.msra.mxu0 0.0
      %585 = vmatprep.subr.mxu0 0.0
      %586 = vmatpush1.msra.mxu0 0.0
      %587 = vmatprep.subr.mxu0 0.0
      %588 = vmatpush1.msra.mxu0 0.0
      %589 = vmatprep.subr.mxu0 0.0
      %590 = vmatpush1.msra.mxu0 0.0
      %591 = vmatprep.subr.mxu0 0.0
      %592 = vmatpush1.msra.mxu0 0.0
      %593 = vmatprep.subr.mxu0 0.0
      %594 = vmatpush1.msra.mxu0 0.0
      %595 = vmatprep.subr.mxu0 0.0
      %596 = vmatpush1.msra.mxu0 0.0
      %597 = vmatprep.subr.mxu0 0.0
      %598 = vmatpush1.msra.mxu0 0.0
      %599 = vmatprep.subr.mxu0 0.0
      %600 = vmatpush1.msra.mxu0 0.0
      %601 = vmatprep.subr.mxu0 0.0
      %602 = vmatpush1.msra.mxu0 0.0
      %603 = vmatprep.subr.mxu0 0.0
      %604 = vmatpush1.msra.mxu0 0.0
      %605 = vmatprep.subr.mxu0 0.0
      %606 = vmatpush1.msra.mxu0 0.0
      %607 = vmatprep.subr.mxu0 0.0
      %608 = vmatpush1.msra.mxu0 0.0
      %609 = vmatprep.subr.mxu0 0.0
      %610 = vmatpush1.msra.mxu0 0.0
      %611 = vmatprep.subr.mxu0 0.0
      %612 = vmatpush1.msra.mxu0 0.0
      %613 = vmatprep.subr.mxu0 0.0
      %614 = vmatpush1.msra.mxu0 0.0
      %615 = vmatprep.mubr.f32.mxu0 0.0
      %616 = vmatmul.mubr.f32.gmra.mrb[0].mxu0 %v494
      %v617 = vpop.f32.mrb[0].mxu0
      %v618 = vadd.f32 %v490, %v617
      %v619 = vpop.f32.mrb[0].mxu0
      %620 = vmatprep.mubr.f32.mxu0 0.0
      %621 = vmatmul.mubr.f32.gmra.mrb[0].mxu0 %v497
      %v622 = vpop.f32.mrb[0].mxu0
      %v623 = vadd.f32 %v490, %v622
      %v624 = vpop.f32.mrb[0].mxu0
      %625 = vmatprep.mubr.f32.mxu0 0.0
      %626 = vmatmul.mubr.f32.gmra.mrb[0].mxu0 %v500
      %v627 = vpop.f32.mrb[0].mxu0
      %v628 = vadd.f32 %v490, %v627
      %v629 = vpop.f32.mrb[0].mxu0
      %630 = vmatprep.mubr.f32.mxu0 0.0
      %631 = vmatmul.mubr.f32.gmra.mrb[0].mxu0 %v503
      %v632 = vpop.f32.mrb[0].mxu0
      %v633 = vadd.f32 %v490, %v632
      %v634 = vpop.f32.mrb[0].mxu0
      %635 = vmatprep.mubr.f32.mxu0 0.0
      %636 = vmatmul.mubr.f32.gmra.mrb[0].mxu0 %v506
      %v637 = vpop.f32.mrb[0].mxu0
      %v638 = vadd.f32 %v490, %v637
      %v639 = vpop.f32.mrb[0].mxu0
      %640 = vmatprep.mubr.f32.mxu0 0.0
      %641 = vmatmul.mubr.f32.gmra.mrb[0].mxu0 %v509
      %v642 = vpop.f32.mrb[0].mxu0
      %v643 = vadd.f32 %v490, %v642
      %v644 = vpop.f32.mrb[0].mxu0
      %645 = vmatprep.mubr.f32.mxu0 0.0
      %646 = vmatmul.mubr.f32.gmra.mrb[0].mxu0 %v512
      %v647 = vpop.f32.mrb[0].mxu0
      %v648 = vadd.f32 %v490, %v647
      %v649 = vpop.f32.mrb[0].mxu0
      %650 = vmatprep.mubr.f32.mxu0 0.0
      %651 = vmatmul.mubr.f32.gmra.mrb[0].mxu0 %v515
      %v652 = vpop.f32.mrb[0].mxu0
      %v653 = vadd.f32 %v490, %v652
      %v654 = vpop.f32.mrb[0].mxu0
      %655 = vmatprep.mubr.f32.mxu0 0.0
      %656 = vmatmul.mubr.f32.gmra.mrb[0].mxu0 %v518
      %v657 = vpop.f32.mrb[0].mxu0
      %v658 = vadd.f32 %v490, %v657
      %v659 = vpop.f32.mrb[0].mxu0
      %660 = vmatprep.mubr.f32.mxu0 0.0
      %661 = vmatmul.mubr.f32.gmra.mrb[0].mxu0 %v521
      %v662 = vpop.f32.mrb[0].mxu0
      %v663 = vadd.f32 %v490, %v662
      %v664 = vpop.f32.mrb[0].mxu0
      %665 = vmatprep.mubr.f32.mxu0 0.0
      %666 = vmatmul.mubr.f32.gmra.mrb[0].mxu0 %v524
      %v667 = vpop.f32.mrb[0].mxu0
      %v668 = vadd.f32 %v490, %v667
      %v669 = vpop.f32.mrb[0].mxu0
      %670 = vmatprep.mubr.f32.mxu0 0.0
      %671 = vmatmul.mubr.f32.gmra.mrb[0].mxu0 %v527
      %v672 = vpop.f32.mrb[0].mxu0
      %v673 = vadd.f32 %v490, %v672
      %v674 = vpop.f32.mrb[0].mxu0
      %675 = vmatprep.mubr.f32.mxu0 0.0
      %676 = vmatmul.mubr.f32.gmra.mrb[0].mxu0 %v530
      %v677 = vpop.f32.mrb[0].mxu0
      %v678 = vadd.f32 %v490, %v677
      %v679 = vpop.f32.mrb[0].mxu0
      %680 = vmatprep.mubr.f32.mxu0 0.0
      %681 = vmatmul.mubr.f32.gmra.mrb[0].mxu0 %v533
      %v682 = vpop.f32.mrb[0].mxu0
      %v683 = vadd.f32 %v490, %v682
      %v684 = vpop.f32.mrb[0].mxu0
      %685 = vmatprep.mubr.f32.mxu0 0.0
      %686 = vmatmul.mubr.f32.gmra.mrb[0].mxu0 %v536
      %v687 = vpop.f32.mrb[0].mxu0
      %v688 = vadd.f32 %v490, %v687
      %v689 = vpop.f32.mrb[0].mxu0
      %690 = vmatprep.mubr.f32.mxu0 0.0
      %691 = vmatmul.mubr.f32.gmra.mrb[0].mxu0 %v539
      %v692 = vpop.f32.mrb[0].mxu0
      %v693 = vadd.f32 %v490, %v692
      %v694 = vpop.f32.mrb[0].mxu0
      %695 = vmatprep.mubr.f32.mxu0 0.0
      %696 = vmatmul.mubr.f32.gmra.mrb[0].mxu0 %v542
      %v697 = vpop.f32.mrb[0].mxu0
      %v698 = vadd.f32 %v490, %v697
      %v699 = vpop.f32.mrb[0].mxu0
      %700 = vmatprep.mubr.f32.mxu0 0.0
      %701 = vmatmul.mubr.f32.gmra.mrb[0].mxu0 %v545
      %v702 = vpop.f32.mrb[0].mxu0
      %v703 = vadd.f32 %v490, %v702
      %v704 = vpop.f32.mrb[0].mxu0
      %705 = vdwg.mxu0
      %v706 = vmax.f32 %v618, 0.0
      %v707 = vmax.f32 %v623, 0.0
      %v708 = vmax.f32 %v628, 0.0
      %v709 = vmax.f32 %v633, 0.0
      %v710 = vmax.f32 %v638, 0.0
      %v711 = vmax.f32 %v643, 0.0
      %v712 = vmax.f32 %v648, 0.0
      %v713 = vmax.f32 %v653, 0.0
      %v714 = vmax.f32 %v658, 0.0
      %v715 = vmax.f32 %v663, 0.0
      %v716 = vmax.f32 %v668, 0.0
      %v717 = vmax.f32 %v673, 0.0
      %v718 = vmax.f32 %v678, 0.0
      %v719 = vmax.f32 %v683, 0.0
      %v720 = vmax.f32 %v688, 0.0
      %v721 = vmax.f32 %v693, 0.0
      %v722 = vmax.f32 %v698, 0.0
      %v723 = vmax.f32 %v703, 0.0
      %vm724 = vcmask 64512
      %725 = vst.msk [vmem:[#allocation2] sm:$0xff] %vm724, %v720
      %726 = vst.msk [vmem:[#allocation2 + $0x8] sm:$0xff] %vm724, %v721
      %p727 = scmp.eq.s32.totalorder %s26, 0
      %s728 = scalar_select %p727, 1, 0
      %v729 = vstv %s728
      %vm730 = vcmp.eq.s32.totalorder %v729, 1
      %v731 = vsel %vm730, 0.0, %v464
      %v732 = vsel %vm730, 0.0, %v465
      %p733 = scmp.eq.s32.totalorder %s26, 1
      %s734 = scalar_select %p733, 1, 0
      %v735 = vstv %s734
      %vm736 = vcmp.eq.s32.totalorder %v735, 1
      %v737 = vsel %vm736, 0.0, %v722
      %v738 = vsel %vm736, 0.0, %v723
      %vm759 = vcmask 1040384
      %v760 = vrot.slane %v731, 7
      %v761 = vrot.slane %v732, 7
      %v762 = vsel %vm759, %v760, %v761
      %v763 = vrot.slane %v706, 7
      %v764 = vrot.slane %v707, 7
      %v765 = vsel %vm759, %v763, %v764
      %v766 = vrot.slane %v708, 7
      %v767 = vrot.slane %v709, 7
      %v768 = vsel %vm759, %v766, %v767
      %v769 = vrot.slane %v710, 7
      %v770 = vrot.slane %v711, 7
      %v771 = vsel %vm759, %v769, %v770
      %v772 = vrot.slane %v712, 7
      %v773 = vrot.slane %v713, 7
      %v774 = vsel %vm759, %v772, %v773
      %v775 = vrot.slane %v714, 7
      %v776 = vrot.slane %v715, 7
      %v777 = vsel %vm759, %v775, %v776
      %v778 = vrot.slane %v716, 7
      %v779 = vrot.slane %v717, 7
      %v780 = vsel %vm759, %v778, %v779
      %v781 = vrot.slane %v718, 7
      %v782 = vrot.slane %v719, 7
      %v783 = vsel %vm759, %v781, %v782
      %v784 = vrot.slane %v720, 7
      %v785 = vrot.slane %v721, 7
      %v786 = vsel %vm759, %v784, %v785
      %v787 = vrot.slane %v737, 7
      %v788 = vrot.slane %v738, 7
      %v789 = vsel %vm759, %v787, %v788
      %v820 = vsel %vm759, 0.0, %v760
      %v821 = vsel %vm759, 0.0, %v763
      %v822 = vsel %vm759, 0.0, %v766
      %v823 = vsel %vm759, 0.0, %v769
      %v824 = vsel %vm759, 0.0, %v772
      %v825 = vsel %vm759, 0.0, %v775
      %v826 = vsel %vm759, 0.0, %v778
      %v827 = vsel %vm759, 0.0, %v781
      %v828 = vsel %vm759, 0.0, %v784
      %v829 = vsel %vm759, 0.0, %v787
      %v830 = vsel %vm759, %v761, 0.0
      %v831 = vsel %vm759, %v764, 0.0
      %v832 = vsel %vm759, %v767, 0.0
      %v833 = vsel %vm759, %v770, 0.0
      %v834 = vsel %vm759, %v773, 0.0
      %v835 = vsel %vm759, %v776, 0.0
      %v836 = vsel %vm759, %v779, 0.0
      %v837 = vsel %vm759, %v782, 0.0
      %v838 = vsel %vm759, %v785, 0.0
      %v839 = vsel %vm759, %v788, 0.0
      %v840 = vld [vmem:[%s4] sm:$0x7]
      %v841 = vld [vmem:[%s4 + $0x4] sm:$0x7]
      %v842 = vld [vmem:[%s4 + $0x8] sm:$0x7]
      %v843 = vlaneseq
      %v844 = vshrl.u32 %v843, 7
      %v845 = vsub.s32 0, %v844
      %v846 = vrot.slane %v840, %v845
      %v847 = vmul.f32 %v820, %v846
      %v848 = vmul.f32 %v762, %v846
      %v849 = vmul.f32 %v821, %v846
      %v850 = vmul.f32 %v765, %v846
      %v851 = vmul.f32 %v822, %v846
      %v852 = vmul.f32 %v768, %v846
      %v853 = vmul.f32 %v823, %v846
      %v854 = vmul.f32 %v771, %v846
      %v855 = vmul.f32 %v824, %v846
      %v856 = vmul.f32 %v774, %v846
      %v857 = vmul.f32 %v825, %v846
      %v858 = vmul.f32 %v777, %v846
      %v859 = vmul.f32 %v826, %v846
      %v860 = vmul.f32 %v780, %v846
      %v861 = vmul.f32 %v827, %v846
      %v862 = vmul.f32 %v783, %v846
      %v863 = vadd.f32 %v847, 0.0
      %v864 = vadd.f32 %v848, 0.0
      %v865 = vadd.f32 %v849, 0.0
      %v866 = vadd.f32 %v850, 0.0
      %v867 = vadd.f32 %v851, 0.0
      %v868 = vadd.f32 %v852, 0.0
      %v869 = vadd.f32 %v853, 0.0
      %v870 = vadd.f32 %v854, 0.0
      %v871 = vadd.f32 %v855, 0.0
      %v872 = vadd.f32 %v856, 0.0
      %v873 = vadd.f32 %v857, 0.0
      %v874 = vadd.f32 %v858, 0.0
      %v875 = vadd.f32 %v859, 0.0
      %v876 = vadd.f32 %v860, 0.0
      %v877 = vadd.f32 %v861, 0.0
      %v878 = vadd.f32 %v862, 0.0
      %v879 = vlaneseq
      %v880 = vshrl.u32 %v879, 7
      %v881 = vsub.s32 1, %v880
      %v882 = vrot.slane %v840, %v881
      %v883 = vmul.f32 %v820, %v882
      %v884 = vmul.f32 %v762, %v882
      %v885 = vmul.f32 %v830, %v882
      %v886 = vmul.f32 %v821, %v882
      %v887 = vmul.f32 %v765, %v882
      %v888 = vmul.f32 %v831, %v882
      %v889 = vmul.f32 %v822, %v882
      %v890 = vmul.f32 %v768, %v882
      %v891 = vmul.f32 %v832, %v882
      %v892 = vmul.f32 %v823, %v882
      %v893 = vmul.f32 %v771, %v882
      %v894 = vmul.f32 %v833, %v882
      %v895 = vmul.f32 %v824, %v882
      %v896 = vmul.f32 %v774, %v882
      %v897 = vmul.f32 %v834, %v882
      %v898 = vmul.f32 %v825, %v882
      %v899 = vmul.f32 %v777, %v882
      %v900 = vmul.f32 %v835, %v882
      %v901 = vmul.f32 %v826, %v882
      %v902 = vmul.f32 %v780, %v882
      %v903 = vmul.f32 %v836, %v882
      %v904 = vmul.f32 %v827, %v882
      %v905 = vmul.f32 %v783, %v882
      %v906 = vmul.f32 %v837, %v882
      %vm931 = vcmask 1046528
      %v932 = vrot.slane %v883, 1
      %v933 = vrot.slane %v884, 1
      %v934 = vsel %vm931, %v932, %v933
      %v935 = vrot.slane %v885, 1
      %v936 = vsel %vm931, %v933, %v935
      %v937 = vrot.slane %v886, 1
      %v938 = vrot.slane %v887, 1
      %v939 = vsel %vm931, %v937, %v938
      %v940 = vrot.slane %v888, 1
      %v941 = vsel %vm931, %v938, %v940
      %v942 = vrot.slane %v889, 1
      %v943 = vrot.slane %v890, 1
      %v944 = vsel %vm931, %v942, %v943
      %v945 = vrot.slane %v891, 1
      %v946 = vsel %vm931, %v943, %v945
      %v947 = vrot.slane %v892, 1
      %v948 = vrot.slane %v893, 1
      %v949 = vsel %vm931, %v947, %v948
      %v950 = vrot.slane %v894, 1
      %v951 = vsel %vm931, %v948, %v950
      %v952 = vrot.slane %v895, 1
      %v953 = vrot.slane %v896, 1
      %v954 = vsel %vm931, %v952, %v953
      %v955 = vrot.slane %v897, 1
      %v956 = vsel %vm931, %v953, %v955
      %v957 = vrot.slane %v898, 1
      %v958 = vrot.slane %v899, 1
      %v959 = vsel %vm931, %v957, %v958
      %v960 = vrot.slane %v900, 1
      %v961 = vsel %vm931, %v958, %v960
      %v962 = vrot.slane %v901, 1
      %v963 = vrot.slane %v902, 1
      %v964 = vsel %vm931, %v962, %v963
      %v965 = vrot.slane %v903, 1
      %v966 = vsel %vm931, %v963, %v965
      %v967 = vrot.slane %v904, 1
      %v968 = vrot.slane %v905, 1
      %v969 = vsel %vm931, %v967, %v968
      %v970 = vrot.slane %v906, 1
      %v971 = vsel %vm931, %v968, %v970
      %v988 = vadd.f32 %v863, %v934
      %v989 = vadd.f32 %v864, %v936
      %v990 = vadd.f32 %v865, %v939
      %v991 = vadd.f32 %v866, %v941
      %v992 = vadd.f32 %v867, %v944
      %v993 = vadd.f32 %v868, %v946
      %v994 = vadd.f32 %v869, %v949
      %v995 = vadd.f32 %v870, %v951
      %v996 = vadd.f32 %v871, %v954
      %v997 = vadd.f32 %v872, %v956
      %v998 = vadd.f32 %v873, %v959
      %v999 = vadd.f32 %v874, %v961
      %v1000 = vadd.f32 %v875, %v964
      %v1001 = vadd.f32 %v876, %v966
      %v1002 = vadd.f32 %v877, %v969
      %v1003 = vadd.f32 %v878, %v971
      %v1004 = vlaneseq
      %v1005 = vshrl.u32 %v1004, 7
      %v1006 = vsub.s32 2, %v1005
      %v1007 = vrot.slane %v840, %v1006
      %v1008 = vmul.f32 %v820, %v1007
      %v1009 = vmul.f32 %v762, %v1007
      %v1010 = vmul.f32 %v830, %v1007
      %v1011 = vmul.f32 %v821, %v1007
      %v1012 = vmul.f32 %v765, %v1007
      %v1013 = vmul.f32 %v831, %v1007
      %v1014 = vmul.f32 %v822, %v1007
      %v1015 = vmul.f32 %v768, %v1007
      %v1016 = vmul.f32 %v832, %v1007
      %v1017 = vmul.f32 %v823, %v1007
      %v1018 = vmul.f32 %v771, %v1007
      %v1019 = vmul.f32 %v833, %v1007
      %v1020 = vmul.f32 %v824, %v1007
      %v1021 = vmul.f32 %v774, %v1007
      %v1022 = vmul.f32 %v834, %v1007
      %v1023 = vmul.f32 %v825, %v1007
      %v1024 = vmul.f32 %v777, %v1007
      %v1025 = vmul.f32 %v835, %v1007
      %v1026 = vmul.f32 %v826, %v1007
      %v1027 = vmul.f32 %v780, %v1007
      %v1028 = vmul.f32 %v836, %v1007
      %v1029 = vmul.f32 %v827, %v1007
      %v1030 = vmul.f32 %v783, %v1007
      %v1031 = vmul.f32 %v837, %v1007
      %vm1056 = vcmask 1045504
      %v1057 = vrot.slane %v1008, 2
      %v1058 = vrot.slane %v1009, 2
      %v1059 = vsel %vm1056, %v1057, %v1058
      %v1060 = vrot.slane %v1010, 2
      %v1061 = vsel %vm1056, %v1058, %v1060
      %v1062 = vrot.slane %v1011, 2
      %v1063 = vrot.slane %v1012, 2
      %v1064 = vsel %vm1056, %v1062, %v1063
      %v1065 = vrot.slane %v1013, 2
      %v1066 = vsel %vm1056, %v1063, %v1065
      %v1067 = vrot.slane %v1014, 2
      %v1068 = vrot.slane %v1015, 2
      %v1069 = vsel %vm1056, %v1067, %v1068
      %v1070 = vrot.slane %v1016, 2
      %v1071 = vsel %vm1056, %v1068, %v1070
      %v1072 = vrot.slane %v1017, 2
      %v1073 = vrot.slane %v1018, 2
      %v1074 = vsel %vm1056, %v1072, %v1073
      %v1075 = vrot.slane %v1019, 2
      %v1076 = vsel %vm1056, %v1073, %v1075
      %v1077 = vrot.slane %v1020, 2
      %v1078 = vrot.slane %v1021, 2
      %v1079 = vsel %vm1056, %v1077, %v1078
      %v1080 = vrot.slane %v1022, 2
      %v1081 = vsel %vm1056, %v1078, %v1080
      %v1082 = vrot.slane %v1023, 2
      %v1083 = vrot.slane %v1024, 2
      %v1084 = vsel %vm1056, %v1082, %v1083
      %v1085 = vrot.slane %v1025, 2
      %v1086 = vsel %vm1056, %v1083, %v1085
      %v1087 = vrot.slane %v1026, 2
      %v1088 = vrot.slane %v1027, 2
      %v1089 = vsel %vm1056, %v1087, %v1088
      %v1090 = vrot.slane %v1028, 2
      %v1091 = vsel %vm1056, %v1088, %v1090
      %v1092 = vrot.slane %v1029, 2
      %v1093 = vrot.slane %v1030, 2
      %v1094 = vsel %vm1056, %v1092, %v1093
      %v1095 = vrot.slane %v1031, 2
      %v1096 = vsel %vm1056, %v1093, %v1095
      %v1113 = vadd.f32 %v988, %v1059
      %v1114 = vadd.f32 %v989, %v1061
      %v1115 = vadd.f32 %v990, %v1064
      %v1116 = vadd.f32 %v991, %v1066
      %v1117 = vadd.f32 %v992, %v1069
      %v1118 = vadd.f32 %v993, %v1071
      %v1119 = vadd.f32 %v994, %v1074
      %v1120 = vadd.f32 %v995, %v1076
      %v1121 = vadd.f32 %v996, %v1079
      %v1122 = vadd.f32 %v997, %v1081
      %v1123 = vadd.f32 %v998, %v1084
      %v1124 = vadd.f32 %v999, %v1086
      %v1125 = vadd.f32 %v1000, %v1089
      %v1126 = vadd.f32 %v1001, %v1091
      %v1127 = vadd.f32 %v1002, %v1094
      %v1128 = vadd.f32 %v1003, %v1096
      %v1129 = vlaneseq
      %v1130 = vshrl.u32 %v1129, 7
      %v1131 = vsub.s32 0, %v1130
      %v1132 = vrot.slane %v841, %v1131
      %v1133 = vmul.f32 %v821, %v1132
      %v1134 = vmul.f32 %v765, %v1132
      %v1135 = vmul.f32 %v822, %v1132
      %v1136 = vmul.f32 %v768, %v1132
      %v1137 = vmul.f32 %v823, %v1132
      %v1138 = vmul.f32 %v771, %v1132
      %v1139 = vmul.f32 %v824, %v1132
      %v1140 = vmul.f32 %v774, %v1132
      %v1141 = vmul.f32 %v825, %v1132
      %v1142 = vmul.f32 %v777, %v1132
      %v1143 = vmul.f32 %v826, %v1132
      %v1144 = vmul.f32 %v780, %v1132
      %v1145 = vmul.f32 %v827, %v1132
      %v1146 = vmul.f32 %v783, %v1132
      %v1147 = vmul.f32 %v828, %v1132
      %v1148 = vmul.f32 %v786, %v1132
      %v1149 = vadd.f32 %v1113, %v1133
      %v1150 = vadd.f32 %v1114, %v1134
      %v1151 = vadd.f32 %v1115, %v1135
      %v1152 = vadd.f32 %v1116, %v1136
      %v1153 = vadd.f32 %v1117, %v1137
      %v1154 = vadd.f32 %v1118, %v1138
      %v1155 = vadd.f32 %v1119, %v1139
      %v1156 = vadd.f32 %v1120, %v1140
      %v1157 = vadd.f32 %v1121, %v1141
      %v1158 = vadd.f32 %v1122, %v1142
      %v1159 = vadd.f32 %v1123, %v1143
      %v1160 = vadd.f32 %v1124, %v1144
      %v1161 = vadd.f32 %v1125, %v1145
      %v1162 = vadd.f32 %v1126, %v1146
      %v1163 = vadd.f32 %v1127, %v1147
      %v1164 = vadd.f32 %v1128, %v1148
      %v1165 = vlaneseq
      %v1166 = vshrl.u32 %v1165, 7
      %v1167 = vsub.s32 1, %v1166
      %v1168 = vrot.slane %v841, %v1167
      %v1169 = vmul.f32 %v821, %v1168
      %v1170 = vmul.f32 %v765, %v1168
      %v1171 = vmul.f32 %v831, %v1168
      %v1172 = vmul.f32 %v822, %v1168
      %v1173 = vmul.f32 %v768, %v1168
      %v1174 = vmul.f32 %v832, %v1168
      %v1175 = vmul.f32 %v823, %v1168
      %v1176 = vmul.f32 %v771, %v1168
      %v1177 = vmul.f32 %v833, %v1168
      %v1178 = vmul.f32 %v824, %v1168
      %v1179 = vmul.f32 %v774, %v1168
      %v1180 = vmul.f32 %v834, %v1168
      %v1181 = vmul.f32 %v825, %v1168
      %v1182 = vmul.f32 %v777, %v1168
      %v1183 = vmul.f32 %v835, %v1168
      %v1184 = vmul.f32 %v826, %v1168
      %v1185 = vmul.f32 %v780, %v1168
      %v1186 = vmul.f32 %v836, %v1168
      %v1187 = vmul.f32 %v827, %v1168
      %v1188 = vmul.f32 %v783, %v1168
      %v1189 = vmul.f32 %v837, %v1168
      %v1190 = vmul.f32 %v828, %v1168
      %v1191 = vmul.f32 %v786, %v1168
      %v1192 = vmul.f32 %v838, %v1168
      %v1217 = vrot.slane %v1169, 1
      %v1218 = vrot.slane %v1170, 1
      %v1219 = vsel %vm931, %v1217, %v1218
      %v1220 = vrot.slane %v1171, 1
      %v1221 = vsel %vm931, %v1218, %v1220
      %v1222 = vrot.slane %v1172, 1
      %v1223 = vrot.slane %v1173, 1
      %v1224 = vsel %vm931, %v1222, %v1223
      %v1225 = vrot.slane %v1174, 1
      %v1226 = vsel %vm931, %v1223, %v1225
      %v1227 = vrot.slane %v1175, 1
      %v1228 = vrot.slane %v1176, 1
      %v1229 = vsel %vm931, %v1227, %v1228
      %v1230 = vrot.slane %v1177, 1
      %v1231 = vsel %vm931, %v1228, %v1230
      %v1232 = vrot.slane %v1178, 1
      %v1233 = vrot.slane %v1179, 1
      %v1234 = vsel %vm931, %v1232, %v1233
      %v1235 = vrot.slane %v1180, 1
      %v1236 = vsel %vm931, %v1233, %v1235
      %v1237 = vrot.slane %v1181, 1
      %v1238 = vrot.slane %v1182, 1
      %v1239 = vsel %vm931, %v1237, %v1238
      %v1240 = vrot.slane %v1183, 1
      %v1241 = vsel %vm931, %v1238, %v1240
      %v1242 = vrot.slane %v1184, 1
      %v1243 = vrot.slane %v1185, 1
      %v1244 = vsel %vm931, %v1242, %v1243
      %v1245 = vrot.slane %v1186, 1
      %v1246 = vsel %vm931, %v1243, %v1245
      %v1247 = vrot.slane %v1187, 1
      %v1248 = vrot.slane %v1188, 1
      %v1249 = vsel %vm931, %v1247, %v1248
      %v1250 = vrot.slane %v1189, 1
      %v1251 = vsel %vm931, %v1248, %v1250
      %v1252 = vrot.slane %v1190, 1
      %v1253 = vrot.slane %v1191, 1
      %v1254 = vsel %vm931, %v1252, %v1253
      %v1255 = vrot.slane %v1192, 1
      %v1256 = vsel %vm931, %v1253, %v1255
      %v1273 = vadd.f32 %v1149, %v1219
      %v1274 = vadd.f32 %v1150, %v1221
      %v1275 = vadd.f32 %v1151, %v1224
      %v1276 = vadd.f32 %v1152, %v1226
      %v1277 = vadd.f32 %v1153, %v1229
      %v1278 = vadd.f32 %v1154, %v1231
      %v1279 = vadd.f32 %v1155, %v1234
      %v1280 = vadd.f32 %v1156, %v1236
      %v1281 = vadd.f32 %v1157, %v1239
      %v1282 = vadd.f32 %v1158, %v1241
      %v1283 = vadd.f32 %v1159, %v1244
      %v1284 = vadd.f32 %v1160, %v1246
      %v1285 = vadd.f32 %v1161, %v1249
      %v1286 = vadd.f32 %v1162, %v1251
      %v1287 = vadd.f32 %v1163, %v1254
      %v1288 = vadd.f32 %v1164, %v1256
      %v1289 = vlaneseq
      %v1290 = vshrl.u32 %v1289, 7
      %v1291 = vsub.s32 2, %v1290
      %v1292 = vrot.slane %v841, %v1291
      %v1293 = vmul.f32 %v821, %v1292
      %v1294 = vmul.f32 %v765, %v1292
      %v1295 = vmul.f32 %v831, %v1292
      %v1296 = vmul.f32 %v822, %v1292
      %v1297 = vmul.f32 %v768, %v1292
      %v1298 = vmul.f32 %v832, %v1292
      %v1299 = vmul.f32 %v823, %v1292
      %v1300 = vmul.f32 %v771, %v1292
      %v1301 = vmul.f32 %v833, %v1292
      %v1302 = vmul.f32 %v824, %v1292
      %v1303 = vmul.f32 %v774, %v1292
      %v1304 = vmul.f32 %v834, %v1292
      %v1305 = vmul.f32 %v825, %v1292
      %v1306 = vmul.f32 %v777, %v1292
      %v1307 = vmul.f32 %v835, %v1292
      %v1308 = vmul.f32 %v826, %v1292
      %v1309 = vmul.f32 %v780, %v1292
      %v1310 = vmul.f32 %v836, %v1292
      %v1311 = vmul.f32 %v827, %v1292
      %v1312 = vmul.f32 %v783, %v1292
      %v1313 = vmul.f32 %v837, %v1292
      %v1314 = vmul.f32 %v828, %v1292
      %v1315 = vmul.f32 %v786, %v1292
      %v1316 = vmul.f32 %v838, %v1292
      %v1341 = vrot.slane %v1293, 2
      %v1342 = vrot.slane %v1294, 2
      %v1343 = vsel %vm1056, %v1341, %v1342
      %v1344 = vrot.slane %v1295, 2
      %v1345 = vsel %vm1056, %v1342, %v1344
      %v1346 = vrot.slane %v1296, 2
      %v1347 = vrot.slane %v1297, 2
      %v1348 = vsel %vm1056, %v1346, %v1347
      %v1349 = vrot.slane %v1298, 2
      %v1350 = vsel %vm1056, %v1347, %v1349
      %v1351 = vrot.slane %v1299, 2
      %v1352 = vrot.slane %v1300, 2
      %v1353 = vsel %vm1056, %v1351, %v1352
      %v1354 = vrot.slane %v1301, 2
      %v1355 = vsel %vm1056, %v1352, %v1354
      %v1356 = vrot.slane %v1302, 2
      %v1357 = vrot.slane %v1303, 2
      %v1358 = vsel %vm1056, %v1356, %v1357
      %v1359 = vrot.slane %v1304, 2
      %v1360 = vsel %vm1056, %v1357, %v1359
      %v1361 = vrot.slane %v1305, 2
      %v1362 = vrot.slane %v1306, 2
      %v1363 = vsel %vm1056, %v1361, %v1362
      %v1364 = vrot.slane %v1307, 2
      %v1365 = vsel %vm1056, %v1362, %v1364
      %v1366 = vrot.slane %v1308, 2
      %v1367 = vrot.slane %v1309, 2
      %v1368 = vsel %vm1056, %v1366, %v1367
      %v1369 = vrot.slane %v1310, 2
      %v1370 = vsel %vm1056, %v1367, %v1369
      %v1371 = vrot.slane %v1311, 2
      %v1372 = vrot.slane %v1312, 2
      %v1373 = vsel %vm1056, %v1371, %v1372
      %v1374 = vrot.slane %v1313, 2
      %v1375 = vsel %vm1056, %v1372, %v1374
      %v1376 = vrot.slane %v1314, 2
      %v1377 = vrot.slane %v1315, 2
      %v1378 = vsel %vm1056, %v1376, %v1377
      %v1379 = vrot.slane %v1316, 2
      %v1380 = vsel %vm1056, %v1377, %v1379
      %v1397 = vadd.f32 %v1273, %v1343
      %v1398 = vadd.f32 %v1274, %v1345
      %v1399 = vadd.f32 %v1275, %v1348
      %v1400 = vadd.f32 %v1276, %v1350
      %v1401 = vadd.f32 %v1277, %v1353
      %v1402 = vadd.f32 %v1278, %v1355
      %v1403 = vadd.f32 %v1279, %v1358
      %v1404 = vadd.f32 %v1280, %v1360
      %v1405 = vadd.f32 %v1281, %v1363
      %v1406 = vadd.f32 %v1282, %v1365
      %v1407 = vadd.f32 %v1283, %v1368
      %v1408 = vadd.f32 %v1284, %v1370
      %v1409 = vadd.f32 %v1285, %v1373
      %v1410 = vadd.f32 %v1286, %v1375
      %v1411 = vadd.f32 %v1287, %v1378
      %v1412 = vadd.f32 %v1288, %v1380
      %v1413 = vlaneseq
      %v1414 = vshrl.u32 %v1413, 7
      %v1415 = vsub.s32 0, %v1414
      %v1416 = vrot.slane %v842, %v1415
      %v1417 = vmul.f32 %v822, %v1416
      %v1418 = vmul.f32 %v768, %v1416
      %v1419 = vmul.f32 %v823, %v1416
      %v1420 = vmul.f32 %v771, %v1416
      %v1421 = vmul.f32 %v824, %v1416
      %v1422 = vmul.f32 %v774, %v1416
      %v1423 = vmul.f32 %v825, %v1416
      %v1424 = vmul.f32 %v777, %v1416
      %v1425 = vmul.f32 %v826, %v1416
      %v1426 = vmul.f32 %v780, %v1416
      %v1427 = vmul.f32 %v827, %v1416
      %v1428 = vmul.f32 %v783, %v1416
      %v1429 = vmul.f32 %v828, %v1416
      %v1430 = vmul.f32 %v786, %v1416
      %v1431 = vmul.f32 %v829, %v1416
      %v1432 = vmul.f32 %v789, %v1416
      %v1433 = vadd.f32 %v1397, %v1417
      %v1434 = vadd.f32 %v1398, %v1418
      %v1435 = vadd.f32 %v1399, %v1419
      %v1436 = vadd.f32 %v1400, %v1420
      %v1437 = vadd.f32 %v1401, %v1421
      %v1438 = vadd.f32 %v1402, %v1422
      %v1439 = vadd.f32 %v1403, %v1423
      %v1440 = vadd.f32 %v1404, %v1424
      %v1441 = vadd.f32 %v1405, %v1425
      %v1442 = vadd.f32 %v1406, %v1426
      %v1443 = vadd.f32 %v1407, %v1427
      %v1444 = vadd.f32 %v1408, %v1428
      %v1445 = vadd.f32 %v1409, %v1429
      %v1446 = vadd.f32 %v1410, %v1430
      %v1447 = vadd.f32 %v1411, %v1431
      %v1448 = vadd.f32 %v1412, %v1432
      %v1449 = vlaneseq
      %v1450 = vshrl.u32 %v1449, 7
      %v1451 = vsub.s32 1, %v1450
      %v1452 = vrot.slane %v842, %v1451
      %v1453 = vmul.f32 %v822, %v1452
      %v1454 = vmul.f32 %v768, %v1452
      %v1455 = vmul.f32 %v832, %v1452
      %v1456 = vmul.f32 %v823, %v1452
      %v1457 = vmul.f32 %v771, %v1452
      %v1458 = vmul.f32 %v833, %v1452
      %v1459 = vmul.f32 %v824, %v1452
      %v1460 = vmul.f32 %v774, %v1452
      %v1461 = vmul.f32 %v834, %v1452
      %v1462 = vmul.f32 %v825, %v1452
      %v1463 = vmul.f32 %v777, %v1452
      %v1464 = vmul.f32 %v835, %v1452
      %v1465 = vmul.f32 %v826, %v1452
      %v1466 = vmul.f32 %v780, %v1452
      %v1467 = vmul.f32 %v836, %v1452
      %v1468 = vmul.f32 %v827, %v1452
      %v1469 = vmul.f32 %v783, %v1452
      %v1470 = vmul.f32 %v837, %v1452
      %v1471 = vmul.f32 %v828, %v1452
      %v1472 = vmul.f32 %v786, %v1452
      %v1473 = vmul.f32 %v838, %v1452
      %v1474 = vmul.f32 %v829, %v1452
      %v1475 = vmul.f32 %v789, %v1452
      %v1476 = vmul.f32 %v839, %v1452
      %v1501 = vrot.slane %v1453, 1
      %v1502 = vrot.slane %v1454, 1
      %v1503 = vsel %vm931, %v1501, %v1502
      %v1504 = vrot.slane %v1455, 1
      %v1505 = vsel %vm931, %v1502, %v1504
      %v1506 = vrot.slane %v1456, 1
      %v1507 = vrot.slane %v1457, 1
      %v1508 = vsel %vm931, %v1506, %v1507
      %v1509 = vrot.slane %v1458, 1
      %v1510 = vsel %vm931, %v1507, %v1509
      %v1511 = vrot.slane %v1459, 1
      %v1512 = vrot.slane %v1460, 1
      %v1513 = vsel %vm931, %v1511, %v1512
      %v1514 = vrot.slane %v1461, 1
      %v1515 = vsel %vm931, %v1512, %v1514
      %v1516 = vrot.slane %v1462, 1
      %v1517 = vrot.slane %v1463, 1
      %v1518 = vsel %vm931, %v1516, %v1517
      %v1519 = vrot.slane %v1464, 1
      %v1520 = vsel %vm931, %v1517, %v1519
      %v1521 = vrot.slane %v1465, 1
      %v1522 = vrot.slane %v1466, 1
      %v1523 = vsel %vm931, %v1521, %v1522
      %v1524 = vrot.slane %v1467, 1
      %v1525 = vsel %vm931, %v1522, %v1524
      %v1526 = vrot.slane %v1468, 1
      %v1527 = vrot.slane %v1469, 1
      %v1528 = vsel %vm931, %v1526, %v1527
      %v1529 = vrot.slane %v1470, 1
      %v1530 = vsel %vm931, %v1527, %v1529
      %v1531 = vrot.slane %v1471, 1
      %v1532 = vrot.slane %v1472, 1
      %v1533 = vsel %vm931, %v1531, %v1532
      %v1534 = vrot.slane %v1473, 1
      %v1535 = vsel %vm931, %v1532, %v1534
      %v1536 = vrot.slane %v1474, 1
      %v1537 = vrot.slane %v1475, 1
      %v1538 = vsel %vm931, %v1536, %v1537
      %v1539 = vrot.slane %v1476, 1
      %v1540 = vsel %vm931, %v1537, %v1539
      %v1557 = vadd.f32 %v1433, %v1503
      %v1558 = vadd.f32 %v1434, %v1505
      %v1559 = vadd.f32 %v1435, %v1508
      %v1560 = vadd.f32 %v1436, %v1510
      %v1561 = vadd.f32 %v1437, %v1513
      %v1562 = vadd.f32 %v1438, %v1515
      %v1563 = vadd.f32 %v1439, %v1518
      %v1564 = vadd.f32 %v1440, %v1520
      %v1565 = vadd.f32 %v1441, %v1523
      %v1566 = vadd.f32 %v1442, %v1525
      %v1567 = vadd.f32 %v1443, %v1528
      %v1568 = vadd.f32 %v1444, %v1530
      %v1569 = vadd.f32 %v1445, %v1533
      %v1570 = vadd.f32 %v1446, %v1535
      %v1571 = vadd.f32 %v1447, %v1538
      %v1572 = vadd.f32 %v1448, %v1540
      %v1573 = vlaneseq
      %v1574 = vshrl.u32 %v1573, 7
      %v1575 = vsub.s32 2, %v1574
      %v1576 = vrot.slane %v842, %v1575
      %v1577 = vmul.f32 %v822, %v1576
      %v1578 = vmul.f32 %v768, %v1576
      %v1579 = vmul.f32 %v832, %v1576
      %v1580 = vmul.f32 %v823, %v1576
      %v1581 = vmul.f32 %v771, %v1576
      %v1582 = vmul.f32 %v833, %v1576
      %v1583 = vmul.f32 %v824, %v1576
      %v1584 = vmul.f32 %v774, %v1576
      %v1585 = vmul.f32 %v834, %v1576
      %v1586 = vmul.f32 %v825, %v1576
      %v1587 = vmul.f32 %v777, %v1576
      %v1588 = vmul.f32 %v835, %v1576
      %v1589 = vmul.f32 %v826, %v1576
      %v1590 = vmul.f32 %v780, %v1576
      %v1591 = vmul.f32 %v836, %v1576
      %v1592 = vmul.f32 %v827, %v1576
      %v1593 = vmul.f32 %v783, %v1576
      %v1594 = vmul.f32 %v837, %v1576
      %v1595 = vmul.f32 %v828, %v1576
      %v1596 = vmul.f32 %v786, %v1576
      %v1597 = vmul.f32 %v838, %v1576
      %v1598 = vmul.f32 %v829, %v1576
      %v1599 = vmul.f32 %v789, %v1576
      %v1600 = vmul.f32 %v839, %v1576
      %v1625 = vrot.slane %v1577, 2
      %v1626 = vrot.slane %v1578, 2
      %v1627 = vsel %vm1056, %v1625, %v1626
      %v1628 = vrot.slane %v1579, 2
      %v1629 = vsel %vm1056, %v1626, %v1628
      %v1630 = vrot.slane %v1580, 2
      %v1631 = vrot.slane %v1581, 2
      %v1632 = vsel %vm1056, %v1630, %v1631
      %v1633 = vrot.slane %v1582, 2
      %v1634 = vsel %vm1056, %v1631, %v1633
      %v1635 = vrot.slane %v1583, 2
      %v1636 = vrot.slane %v1584, 2
      %v1637 = vsel %vm1056, %v1635, %v1636
      %v1638 = vrot.slane %v1585, 2
      %v1639 = vsel %vm1056, %v1636, %v1638
      %v1640 = vrot.slane %v1586, 2
      %v1641 = vrot.slane %v1587, 2
      %v1642 = vsel %vm1056, %v1640, %v1641
      %v1643 = vrot.slane %v1588, 2
      %v1644 = vsel %vm1056, %v1641, %v1643
      %v1645 = vrot.slane %v1589, 2
      %v1646 = vrot.slane %v1590, 2
      %v1647 = vsel %vm1056, %v1645, %v1646
      %v1648 = vrot.slane %v1591, 2
      %v1649 = vsel %vm1056, %v1646, %v1648
      %v1650 = vrot.slane %v1592, 2
      %v1651 = vrot.slane %v1593, 2
      %v1652 = vsel %vm1056, %v1650, %v1651
      %v1653 = vrot.slane %v1594, 2
      %v1654 = vsel %vm1056, %v1651, %v1653
      %v1655 = vrot.slane %v1595, 2
      %v1656 = vrot.slane %v1596, 2
      %v1657 = vsel %vm1056, %v1655, %v1656
      %v1658 = vrot.slane %v1597, 2
      %v1659 = vsel %vm1056, %v1656, %v1658
      %v1660 = vrot.slane %v1598, 2
      %v1661 = vrot.slane %v1599, 2
      %v1662 = vsel %vm1056, %v1660, %v1661
      %v1663 = vrot.slane %v1600, 2
      %v1664 = vsel %vm1056, %v1661, %v1663
      %v1681 = vadd.f32 %v1557, %v1627
      %v1682 = vadd.f32 %v1558, %v1629
      %v1683 = vadd.f32 %v1559, %v1632
      %v1684 = vadd.f32 %v1560, %v1634
      %v1685 = vadd.f32 %v1561, %v1637
      %v1686 = vadd.f32 %v1562, %v1639
      %v1687 = vadd.f32 %v1563, %v1642
      %v1688 = vadd.f32 %v1564, %v1644
      %v1689 = vadd.f32 %v1565, %v1647
      %v1690 = vadd.f32 %v1566, %v1649
      %v1691 = vadd.f32 %v1567, %v1652
      %v1692 = vadd.f32 %v1568, %v1654
      %v1693 = vadd.f32 %v1569, %v1657
      %v1694 = vadd.f32 %v1570, %v1659
      %v1695 = vadd.f32 %v1571, %v1662
      %v1696 = vadd.f32 %v1572, %v1664
      %v1697 = vld [vmem:[%s5] sm:$0x1]
      %v1699 = vlaneseq
      %v1700 = vshrl.u32 %v1699, 7
      %v1701 = vsub.s32 0, %v1700
      %v1702 = vrot.slane %v1697, %v1701
      %v1704 = vadd.f32 %v1681, %v1702
      %v1705 = vadd.f32 %v1682, %v1702
      %v1706 = vadd.f32 %v1683, %v1702
      %v1707 = vadd.f32 %v1684, %v1702
      %v1708 = vadd.f32 %v1685, %v1702
      %v1709 = vadd.f32 %v1686, %v1702
      %v1710 = vadd.f32 %v1687, %v1702
      %v1711 = vadd.f32 %v1688, %v1702
      %v1712 = vadd.f32 %v1689, %v1702
      %v1713 = vadd.f32 %v1690, %v1702
      %v1714 = vadd.f32 %v1691, %v1702
      %v1715 = vadd.f32 %v1692, %v1702
      %v1716 = vadd.f32 %v1693, %v1702
      %v1717 = vadd.f32 %v1694, %v1702
      %v1718 = vadd.f32 %v1695, %v1702
      %v1719 = vadd.f32 %v1696, %v1702
      %v1720 = vmax.f32 %v1704, 0.0
      %v1721 = vmax.f32 %v1705, 0.0
      %v1722 = vmax.f32 %v1706, 0.0
      %v1723 = vmax.f32 %v1707, 0.0
      %v1724 = vmax.f32 %v1708, 0.0
      %v1725 = vmax.f32 %v1709, 0.0
      %v1726 = vmax.f32 %v1710, 0.0
      %v1727 = vmax.f32 %v1711, 0.0
      %v1728 = vmax.f32 %v1712, 0.0
      %v1729 = vmax.f32 %v1713, 0.0
      %v1730 = vmax.f32 %v1714, 0.0
      %v1731 = vmax.f32 %v1715, 0.0
      %v1732 = vmax.f32 %v1716, 0.0
      %v1733 = vmax.f32 %v1717, 0.0
      %v1734 = vmax.f32 %v1718, 0.0
      %v1735 = vmax.f32 %v1719, 0.0
      %v1736 = vld [vmem:[%s6] sm:$0xff]
      %v1737 = vld [vmem:[%s7] sm:$0x1]
      %v1739 = vlaneseq
      %v1740 = vshrl.u32 %v1739, 7
      %v1741 = vsub.s32 0, %v1740
      %v1742 = vrot.slane %v1737, %v1741
      %v1745 = vsel %vm724, %v1720, 0
      %v1748 = vsel %vm724, %v1721, 0
      %v1751 = vsel %vm724, %v1722, 0
      %v1754 = vsel %vm724, %v1723, 0
      %v1757 = vsel %vm724, %v1724, 0
      %v1760 = vsel %vm724, %v1725, 0
      %v1763 = vsel %vm724, %v1726, 0
      %v1766 = vsel %vm724, %v1727, 0
      %v1769 = vsel %vm724, %v1728, 0
      %v1772 = vsel %vm724, %v1729, 0
      %v1775 = vsel %vm724, %v1730, 0
      %v1778 = vsel %vm724, %v1731, 0
      %v1781 = vsel %vm724, %v1732, 0
      %v1784 = vsel %vm724, %v1733, 0
      %v1787 = vsel %vm724, %v1734, 0
      %v1790 = vsel %vm724, %v1735, 0
      %1792 = vmatprep.subr.mxu0 0.0
      %1793 = vmatpush1.msra.mxu0 %v1736
      %1794 = vmatprep.subr.mxu0 0.0
      %1795 = vmatpush1.msra.mxu0 0.0
      %1796 = vmatprep.subr.mxu0 0.0
      %1797 = vmatpush1.msra.mxu0 0.0
      %1798 = vmatprep.subr.mxu0 0.0
      %1799 = vmatpush1.msra.mxu0 0.0
      %1800 = vmatprep.subr.mxu0 0.0
      %1801 = vmatpush1.msra.mxu0 0.0
      %1802 = vmatprep.subr.mxu0 0.0
      %1803 = vmatpush1.msra.mxu0 0.0
      %1804 = vmatprep.subr.mxu0 0.0
      %1805 = vmatpush1.msra.mxu0 0.0
      %1806 = vmatprep.subr.mxu0 0.0
      %1807 = vmatpush1.msra.mxu0 0.0
      %1808 = vmatprep.subr.mxu0 0.0
      %1809 = vmatpush1.msra.mxu0 0.0
      %1810 = vmatprep.subr.mxu0 0.0
      %1811 = vmatpush1.msra.mxu0 0.0
      %1812 = vmatprep.subr.mxu0 0.0
      %1813 = vmatpush1.msra.mxu0 0.0
      %1814 = vmatprep.subr.mxu0 0.0
      %1815 = vmatpush1.msra.mxu0 0.0
      %1816 = vmatprep.subr.mxu0 0.0
      %1817 = vmatpush1.msra.mxu0 0.0
      %1818 = vmatprep.subr.mxu0 0.0
      %1819 = vmatpush1.msra.mxu0 0.0
      %1820 = vmatprep.subr.mxu0 0.0
      %1821 = vmatpush1.msra.mxu0 0.0
      %1822 = vmatprep.subr.mxu0 0.0
      %1823 = vmatpush1.msra.mxu0 0.0
      %1824 = vmatprep.subr.mxu0 0.0
      %1825 = vmatpush1.msra.mxu0 0.0
      %1826 = vmatprep.subr.mxu0 0.0
      %1827 = vmatpush1.msra.mxu0 0.0
      %1828 = vmatprep.subr.mxu0 0.0
      %1829 = vmatpush1.msra.mxu0 0.0
      %1830 = vmatprep.subr.mxu0 0.0
      %1831 = vmatpush1.msra.mxu0 0.0
      %1832 = vmatprep.subr.mxu0 0.0
      %1833 = vmatpush1.msra.mxu0 0.0
      %1834 = vmatprep.subr.mxu0 0.0
      %1835 = vmatpush1.msra.mxu0 0.0
      %1836 = vmatprep.subr.mxu0 0.0
      %1837 = vmatpush1.msra.mxu0 0.0
      %1838 = vmatprep.subr.mxu0 0.0
      %1839 = vmatpush1.msra.mxu0 0.0
      %1840 = vmatprep.subr.mxu0 0.0
      %1841 = vmatpush1.msra.mxu0 0.0
      %1842 = vmatprep.subr.mxu0 0.0
      %1843 = vmatpush1.msra.mxu0 0.0
      %1844 = vmatprep.subr.mxu0 0.0
      %1845 = vmatpush1.msra.mxu0 0.0
      %1846 = vmatprep.subr.mxu0 0.0
      %1847 = vmatpush1.msra.mxu0 0.0
      %1848 = vmatprep.subr.mxu0 0.0
      %1849 = vmatpush1.msra.mxu0 0.0
      %1850 = vmatprep.subr.mxu0 0.0
      %1851 = vmatpush1.msra.mxu0 0.0
      %1852 = vmatprep.subr.mxu0 0.0
      %1853 = vmatpush1.msra.mxu0 0.0
      %1854 = vmatprep.subr.mxu0 0.0
      %1855 = vmatpush1.msra.mxu0 0.0
      %1856 = vmatprep.mubr.f32.mxu0 0.0
      %1857 = vmatmul.mubr.f32.gmra.mrb[0].mxu0 %v1745
      %v1858 = vpop.f32.mrb[0].mxu0
      %v1859 = vadd.f32 %v1742, %v1858
      %v1860 = vpop.f32.mrb[0].mxu0
      %1861 = vmatprep.mubr.f32.mxu0 0.0
      %1862 = vmatmul.mubr.f32.gmra.mrb[0].mxu0 %v1748
      %v1863 = vpop.f32.mrb[0].mxu0
      %v1864 = vadd.f32 %v1742, %v1863
      %v1865 = vpop.f32.mrb[0].mxu0
      %1866 = vmatprep.mubr.f32.mxu0 0.0
      %1867 = vmatmul.mubr.f32.gmra.mrb[0].mxu0 %v1751
      %v1868 = vpop.f32.mrb[0].mxu0
      %v1869 = vadd.f32 %v1742, %v1868
      %v1870 = vpop.f32.mrb[0].mxu0
      %1871 = vmatprep.mubr.f32.mxu0 0.0
      %1872 = vmatmul.mubr.f32.gmra.mrb[0].mxu0 %v1754
      %v1873 = vpop.f32.mrb[0].mxu0
      %v1874 = vadd.f32 %v1742, %v1873
      %v1875 = vpop.f32.mrb[0].mxu0
      %1876 = vmatprep.mubr.f32.mxu0 0.0
      %1877 = vmatmul.mubr.f32.gmra.mrb[0].mxu0 %v1757
      %v1878 = vpop.f32.mrb[0].mxu0
      %v1879 = vadd.f32 %v1742, %v1878
      %v1880 = vpop.f32.mrb[0].mxu0
      %1881 = vmatprep.mubr.f32.mxu0 0.0
      %1882 = vmatmul.mubr.f32.gmra.mrb[0].mxu0 %v1760
      %v1883 = vpop.f32.mrb[0].mxu0
      %v1884 = vadd.f32 %v1742, %v1883
      %v1885 = vpop.f32.mrb[0].mxu0
      %1886 = vmatprep.mubr.f32.mxu0 0.0
      %1887 = vmatmul.mubr.f32.gmra.mrb[0].mxu0 %v1763
      %v1888 = vpop.f32.mrb[0].mxu0
      %v1889 = vadd.f32 %v1742, %v1888
      %v1890 = vpop.f32.mrb[0].mxu0
      %1891 = vmatprep.mubr.f32.mxu0 0.0
      %1892 = vmatmul.mubr.f32.gmra.mrb[0].mxu0 %v1766
      %v1893 = vpop.f32.mrb[0].mxu0
      %v1894 = vadd.f32 %v1742, %v1893
      %v1895 = vpop.f32.mrb[0].mxu0
      %1896 = vmatprep.mubr.f32.mxu0 0.0
      %1897 = vmatmul.mubr.f32.gmra.mrb[0].mxu0 %v1769
      %v1898 = vpop.f32.mrb[0].mxu0
      %v1899 = vadd.f32 %v1742, %v1898
      %v1900 = vpop.f32.mrb[0].mxu0
      %1901 = vmatprep.mubr.f32.mxu0 0.0
      %1902 = vmatmul.mubr.f32.gmra.mrb[0].mxu0 %v1772
      %v1903 = vpop.f32.mrb[0].mxu0
      %v1904 = vadd.f32 %v1742, %v1903
      %v1905 = vpop.f32.mrb[0].mxu0
      %1906 = vmatprep.mubr.f32.mxu0 0.0
      %1907 = vmatmul.mubr.f32.gmra.mrb[0].mxu0 %v1775
      %v1908 = vpop.f32.mrb[0].mxu0
      %v1909 = vadd.f32 %v1742, %v1908
      %v1910 = vpop.f32.mrb[0].mxu0
      %1911 = vmatprep.mubr.f32.mxu0 0.0
      %1912 = vmatmul.mubr.f32.gmra.mrb[0].mxu0 %v1778
      %v1913 = vpop.f32.mrb[0].mxu0
      %v1914 = vadd.f32 %v1742, %v1913
      %v1915 = vpop.f32.mrb[0].mxu0
      %1916 = vmatprep.mubr.f32.mxu0 0.0
      %1917 = vmatmul.mubr.f32.gmra.mrb[0].mxu0 %v1781
      %v1918 = vpop.f32.mrb[0].mxu0
      %v1919 = vadd.f32 %v1742, %v1918
      %v1920 = vpop.f32.mrb[0].mxu0
      %1921 = vmatprep.mubr.f32.mxu0 0.0
      %1922 = vmatmul.mubr.f32.gmra.mrb[0].mxu0 %v1784
      %v1923 = vpop.f32.mrb[0].mxu0
      %v1924 = vadd.f32 %v1742, %v1923
      %v1925 = vpop.f32.mrb[0].mxu0
      %1926 = vmatprep.mubr.f32.mxu0 0.0
      %1927 = vmatmul.mubr.f32.gmra.mrb[0].mxu0 %v1787
      %v1928 = vpop.f32.mrb[0].mxu0
      %v1929 = vadd.f32 %v1742, %v1928
      %v1930 = vpop.f32.mrb[0].mxu0
      %1931 = vmatprep.mubr.f32.mxu0 0.0
      %1932 = vmatmul.mubr.f32.gmra.mrb[0].mxu0 %v1790
      %v1933 = vpop.f32.mrb[0].mxu0
      %v1934 = vadd.f32 %v1742, %v1933
      %v1935 = vpop.f32.mrb[0].mxu0
      %1936 = vdwg.mxu0
      %v1937 = vld [vmem:[%s8] sm:$0xf]
      %v1939 = vsel %vm547, %v1937, 0
      %1941 = vmatprep.subr.mxu0 0.0
      %1942 = vmatpush1.msra.mxu0 %v1939
      %1943 = vmatprep.subr.mxu0 0.0
      %1944 = vmatpush1.msra.mxu0 0.0
      %1945 = vmatprep.subr.mxu0 0.0
      %1946 = vmatpush1.msra.mxu0 0.0
      %1947 = vmatprep.subr.mxu0 0.0
      %1948 = vmatpush1.msra.mxu0 0.0
      %1949 = vmatprep.subr.mxu0 0.0
      %1950 = vmatpush1.msra.mxu0 0.0
      %1951 = vmatprep.subr.mxu0 0.0
      %1952 = vmatpush1.msra.mxu0 0.0
      %1953 = vmatprep.subr.mxu0 0.0
      %1954 = vmatpush1.msra.mxu0 0.0
      %1955 = vmatprep.subr.mxu0 0.0
      %1956 = vmatpush1.msra.mxu0 0.0
      %1957 = vmatprep.subr.mxu0 0.0
      %1958 = vmatpush1.msra.mxu0 0.0
      %1959 = vmatprep.subr.mxu0 0.0
      %1960 = vmatpush1.msra.mxu0 0.0
      %1961 = vmatprep.subr.mxu0 0.0
      %1962 = vmatpush1.msra.mxu0 0.0
      %1963 = vmatprep.subr.mxu0 0.0
      %1964 = vmatpush1.msra.mxu0 0.0
      %1965 = vmatprep.subr.mxu0 0.0
      %1966 = vmatpush1.msra.mxu0 0.0
      %1967 = vmatprep.subr.mxu0 0.0
      %1968 = vmatpush1.msra.mxu0 0.0
      %1969 = vmatprep.subr.mxu0 0.0
      %1970 = vmatpush1.msra.mxu0 0.0
      %1971 = vmatprep.subr.mxu0 0.0
      %1972 = vmatpush1.msra.mxu0 0.0
      %1973 = vmatprep.subr.mxu0 0.0
      %1974 = vmatpush1.msra.mxu0 0.0
      %1975 = vmatprep.subr.mxu0 0.0
      %1976 = vmatpush1.msra.mxu0 0.0
      %1977 = vmatprep.subr.mxu0 0.0
      %1978 = vmatpush1.msra.mxu0 0.0
      %1979 = vmatprep.subr.mxu0 0.0
      %1980 = vmatpush1.msra.mxu0 0.0
      %1981 = vmatprep.subr.mxu0 0.0
      %1982 = vmatpush1.msra.mxu0 0.0
      %1983 = vmatprep.subr.mxu0 0.0
      %1984 = vmatpush1.msra.mxu0 0.0
      %1985 = vmatprep.subr.mxu0 0.0
      %1986 = vmatpush1.msra.mxu0 0.0
      %1987 = vmatprep.subr.mxu0 0.0
      %1988 = vmatpush1.msra.mxu0 0.0
      %1989 = vmatprep.subr.mxu0 0.0
      %1990 = vmatpush1.msra.mxu0 0.0
      %1991 = vmatprep.subr.mxu0 0.0
      %1992 = vmatpush1.msra.mxu0 0.0
      %1993 = vmatprep.subr.mxu0 0.0
      %1994 = vmatpush1.msra.mxu0 0.0
      %1995 = vmatprep.subr.mxu0 0.0
      %1996 = vmatpush1.msra.mxu0 0.0
      %1997 = vmatprep.subr.mxu0 0.0
      %1998 = vmatpush1.msra.mxu0 0.0
      %1999 = vmatprep.subr.mxu0 0.0
      %2000 = vmatpush1.msra.mxu0 0.0
      %2001 = vmatprep.subr.mxu0 0.0
      %2002 = vmatpush1.msra.mxu0 0.0
      %2003 = vmatprep.subr.mxu0 0.0
      %2004 = vmatpush1.msra.mxu0 0.0
      %2005 = vmatprep.mubr.f32.mxu0 0.0
      %2006 = vmatmul.mubr.f32.gmra.mrb[0].mxu0 %v494
      %v2007 = vpop.f32.mrb[0].mxu0
      %v2008 = vadd.f32 0.0, %v2007
      %v2009 = vpop.f32.mrb[0].mxu0
      %2010 = vmatprep.mubr.f32.mxu0 0.0
      %2011 = vmatmul.mubr.f32.gmra.mrb[0].mxu0 %v497
      %v2012 = vpop.f32.mrb[0].mxu0
      %v2013 = vadd.f32 0.0, %v2012
      %v2014 = vpop.f32.mrb[0].mxu0
      %2015 = vmatprep.mubr.f32.mxu0 0.0
      %2016 = vmatmul.mubr.f32.gmra.mrb[0].mxu0 %v500
      %v2017 = vpop.f32.mrb[0].mxu0
      %v2018 = vadd.f32 0.0, %v2017
      %v2019 = vpop.f32.mrb[0].mxu0
      %2020 = vmatprep.mubr.f32.mxu0 0.0
      %2021 = vmatmul.mubr.f32.gmra.mrb[0].mxu0 %v503
      %v2022 = vpop.f32.mrb[0].mxu0
      %v2023 = vadd.f32 0.0, %v2022
      %v2024 = vpop.f32.mrb[0].mxu0
      %2025 = vmatprep.mubr.f32.mxu0 0.0
      %2026 = vmatmul.mubr.f32.gmra.mrb[0].mxu0 %v506
      %v2027 = vpop.f32.mrb[0].mxu0
      %v2028 = vadd.f32 0.0, %v2027
      %v2029 = vpop.f32.mrb[0].mxu0
      %2030 = vmatprep.mubr.f32.mxu0 0.0
      %2031 = vmatmul.mubr.f32.gmra.mrb[0].mxu0 %v509
      %v2032 = vpop.f32.mrb[0].mxu0
      %v2033 = vadd.f32 0.0, %v2032
      %v2034 = vpop.f32.mrb[0].mxu0
      %2035 = vmatprep.mubr.f32.mxu0 0.0
      %2036 = vmatmul.mubr.f32.gmra.mrb[0].mxu0 %v512
      %v2037 = vpop.f32.mrb[0].mxu0
      %v2038 = vadd.f32 0.0, %v2037
      %v2039 = vpop.f32.mrb[0].mxu0
      %2040 = vmatprep.mubr.f32.mxu0 0.0
      %2041 = vmatmul.mubr.f32.gmra.mrb[0].mxu0 %v515
      %v2042 = vpop.f32.mrb[0].mxu0
      %v2043 = vadd.f32 0.0, %v2042
      %v2044 = vpop.f32.mrb[0].mxu0
      %2045 = vmatprep.mubr.f32.mxu0 0.0
      %2046 = vmatmul.mubr.f32.gmra.mrb[0].mxu0 %v518
      %v2047 = vpop.f32.mrb[0].mxu0
      %v2048 = vadd.f32 0.0, %v2047
      %v2049 = vpop.f32.mrb[0].mxu0
      %2050 = vmatprep.mubr.f32.mxu0 0.0
      %2051 = vmatmul.mubr.f32.gmra.mrb[0].mxu0 %v521
      %v2052 = vpop.f32.mrb[0].mxu0
      %v2053 = vadd.f32 0.0, %v2052
      %v2054 = vpop.f32.mrb[0].mxu0
      %2055 = vmatprep.mubr.f32.mxu0 0.0
      %2056 = vmatmul.mubr.f32.gmra.mrb[0].mxu0 %v524
      %v2057 = vpop.f32.mrb[0].mxu0
      %v2058 = vadd.f32 0.0, %v2057
      %v2059 = vpop.f32.mrb[0].mxu0
      %2060 = vmatprep.mubr.f32.mxu0 0.0
      %2061 = vmatmul.mubr.f32.gmra.mrb[0].mxu0 %v527
      %v2062 = vpop.f32.mrb[0].mxu0
      %v2063 = vadd.f32 0.0, %v2062
      %v2064 = vpop.f32.mrb[0].mxu0
      %2065 = vmatprep.mubr.f32.mxu0 0.0
      %2066 = vmatmul.mubr.f32.gmra.mrb[0].mxu0 %v530
      %v2067 = vpop.f32.mrb[0].mxu0
      %v2068 = vadd.f32 0.0, %v2067
      %v2069 = vpop.f32.mrb[0].mxu0
      %2070 = vmatprep.mubr.f32.mxu0 0.0
      %2071 = vmatmul.mubr.f32.gmra.mrb[0].mxu0 %v533
      %v2072 = vpop.f32.mrb[0].mxu0
      %v2073 = vadd.f32 0.0, %v2072
      %v2074 = vpop.f32.mrb[0].mxu0
      %2075 = vmatprep.mubr.f32.mxu0 0.0
      %2076 = vmatmul.mubr.f32.gmra.mrb[0].mxu0 %v536
      %v2077 = vpop.f32.mrb[0].mxu0
      %v2078 = vadd.f32 0.0, %v2077
      %v2079 = vpop.f32.mrb[0].mxu0
      %2080 = vmatprep.mubr.f32.mxu0 0.0
      %2081 = vmatmul.mubr.f32.gmra.mrb[0].mxu0 %v539
      %v2082 = vpop.f32.mrb[0].mxu0
      %v2083 = vadd.f32 0.0, %v2082
      %v2084 = vpop.f32.mrb[0].mxu0
      %2085 = vdwg.mxu0
      %v2086 = vadd.f32 %v1859, %v2008
      %v2087 = vadd.f32 %v1864, %v2013
      %v2088 = vadd.f32 %v1869, %v2018
      %v2089 = vadd.f32 %v1874, %v2023
      %v2090 = vadd.f32 %v1879, %v2028
      %v2091 = vadd.f32 %v1884, %v2033
      %v2092 = vadd.f32 %v1889, %v2038
      %v2093 = vadd.f32 %v1894, %v2043
      %v2094 = vadd.f32 %v1899, %v2048
      %v2095 = vadd.f32 %v1904, %v2053
      %v2096 = vadd.f32 %v1909, %v2058
      %v2097 = vadd.f32 %v1914, %v2063
      %v2098 = vadd.f32 %v1919, %v2068
      %v2099 = vadd.f32 %v1924, %v2073
      %v2100 = vadd.f32 %v1929, %v2078
      %v2101 = vadd.f32 %v1934, %v2083
      %v2102 = vld [vmem:[%s9] sm:$0x1]
      %v2104 = vlaneseq
      %v2105 = vshrl.u32 %v2104, 7
      %v2106 = vsub.s32 0, %v2105
      %v2107 = vrot.slane %v2102, %v2106
      %v2109 = vadd.f32 %v2086, %v2107
      %v2110 = vadd.f32 %v2087, %v2107
      %v2111 = vadd.f32 %v2088, %v2107
      %v2112 = vadd.f32 %v2089, %v2107
      %v2113 = vadd.f32 %v2090, %v2107
      %v2114 = vadd.f32 %v2091, %v2107
      %v2115 = vadd.f32 %v2092, %v2107
      %v2116 = vadd.f32 %v2093, %v2107
      %v2117 = vadd.f32 %v2094, %v2107
      %v2118 = vadd.f32 %v2095, %v2107
      %v2119 = vadd.f32 %v2096, %v2107
      %v2120 = vadd.f32 %v2097, %v2107
      %v2121 = vadd.f32 %v2098, %v2107
      %v2122 = vadd.f32 %v2099, %v2107
      %v2123 = vadd.f32 %v2100, %v2107
      %v2124 = vadd.f32 %v2101, %v2107
      %2125 = vst.msk [vmem:[%s462] sm:$0xff] %vm724, %v2109
      %2126 = vst.msk [vmem:[%s462 + $0x8] sm:$0xff] %vm724, %v2110
      %2127 = vst.msk [vmem:[%s462 + $0x10] sm:$0xff] %vm724, %v2111
      %2128 = vst.msk [vmem:[%s462 + $0x18] sm:$0xff] %vm724, %v2112
      %2129 = vst.msk [vmem:[%s462 + $0x20] sm:$0xff] %vm724, %v2113
      %2130 = vst.msk [vmem:[%s462 + $0x28] sm:$0xff] %vm724, %v2114
      %2131 = vst.msk [vmem:[%s462 + $0x30] sm:$0xff] %vm724, %v2115
      %2132 = vst.msk [vmem:[%s462 + $0x38] sm:$0xff] %vm724, %v2116
      %2133 = vst.msk [vmem:[%s462 + $0x40] sm:$0xff] %vm724, %v2117
      %2134 = vst.msk [vmem:[%s462 + $0x48] sm:$0xff] %vm724, %v2118
      %2135 = vst.msk [vmem:[%s462 + $0x50] sm:$0xff] %vm724, %v2119
      %2136 = vst.msk [vmem:[%s462 + $0x58] sm:$0xff] %vm724, %v2120
      %2137 = vst.msk [vmem:[%s462 + $0x60] sm:$0xff] %vm724, %v2121
      %2138 = vst.msk [vmem:[%s462 + $0x68] sm:$0xff] %vm724, %v2122
      %2139 = vst.msk [vmem:[%s462 + $0x70] sm:$0xff] %vm724, %v2123
      %2140 = vst.msk [vmem:[%s462 + $0x78] sm:$0xff] %vm724, %v2124
      %s2141 = smul.u32 8, %s26
      %p2142 = scmp.lt.s32.totalorder %s25, 1
      %s2143 = scalar_select %p2142, %s25, 1
      %p2144 = scmp.lt.s32.totalorder %s2141, 15
      %s2145 = scalar_select %p2144, %s2141, 15
      %s2146 = smul.addr %s2145, 2
      %s2147 = smul.addr %s2143, 32
      %s2148 = sadd.s32 %s2146, %s2147
      %s2149 = smul.addr %s2148, 8
      %s2150 = scalar_lea.vmem %s10, %s2149
      // Predicated region
      $region61: #{tpu_custom_call.1} parent=59 // pred_check
        %p2151 = pneg %p283
      $region62: #{tpu_custom_call.1} parent=59 // pred_check_branch
        %2153 = sbr.rel (%p2151) target = $region64
      $region63: #{tpu_custom_call.1} parent=59 // pred_region
        %s2154 = smul.u32 8, %s26
      $region64: #{tpu_custom_call.1} parent=59 // pred_fallthru
        _
    $region60: #{tpu_custom_call.1} parent=5 // pred_fallthru
      _
    %p2155 = scmp.le.s32.totalorder 2, %s16
    // Predicated region
    $region65: #{tpu_custom_call.1} parent=5 // pred_check
      %p2156 = pneg %p2155
    $region66: #{tpu_custom_call.1} parent=5 // pred_check_branch
      %2158 = sbr.rel (%p2156) target = $region68
    $region67: #{tpu_custom_call.1} parent=5 // pred_region
      %s2159 = ssub.s32 %s16, 2
      // Predicated region
      $region69: #{tpu_custom_call.1} parent=67 // pred_check
        %p2160 = pneg %p289
      $region70: #{tpu_custom_call.1} parent=67 // pred_check_branch
        %2162 = sbr.rel (%p2160) target = $region72
      $region71: #{tpu_custom_call.1} parent=67 // pred_region
        %s2163 = smul.u32 8, %s28
        %p2164 = scmp.lt.s32.totalorder %s27, 1
        %s2165 = scalar_select %p2164, %s27, 1
        %p2166 = scmp.lt.s32.totalorder %s2163, 15
        %s2167 = scalar_select %p2166, %s2163, 15
        %s2168 = smul.addr %s2167, 2
        %s2169 = smul.addr %s2165, 32
        %s2170 = sadd.s32 %s2168, %s2169
        %s2171 = smul.addr %s2170, 8
        %s2172 = scalar_lea.vmem %s10, %s2171
      $region72: #{tpu_custom_call.1} parent=67 // pred_fallthru
        _
    $region68: #{tpu_custom_call.1} parent=5 // pred_fallthru
      _
  $region6: #{tpu_custom_call.1} parent=0 // loop_footer
    %s20 = sadd.s32 1, %s16
  $region7: #{tpu_custom_call.1} parent=0 // loop_footer_branch
    %15 = sbr.rel target = $region3
  $region8: #{tpu_custom_call.1} parent=0 // loop_exit
    _

</llo_original>
